<compile_context>
chip_gen: v7x
topology: tpu7x:2x2x1
jax: 0.10.0
libtpu: 0.0.40
codegen_flags: <defaults>
</compile_context>

<pallas_src>
import functools

import jax
import jax.numpy as jnp
from jax.experimental import pallas as pl
from jax.experimental.pallas import tpu as pltpu

_LN_EPS = 1e-5          # nn.LayerNorm default eps
_INV_SQRT2 = 0.7071067811865476

# row indices inside the packed f32 vector slab
(_V_N1W, _V_N1B, _V_BQKV, _V_BO, _V_N2W, _V_N2B,
 _V_C1B, _V_C2B, _V_RPB, _V_FNW, _V_FNB) = range(11)
_N_VEC = 11


def _round_up(v, m):
    return (v + m - 1) // m * m


def _layernorm(x, w, b):
    mu = jnp.mean(x, axis=-1, keepdims=True)
    xc = x - mu
    var = jnp.mean(xc * xc, axis=-1, keepdims=True)
    return xc * jax.lax.rsqrt(var + _LN_EPS) * w + b


def _gelu_exact(x):
    # nn.GELU() default (erf form, not the tanh approximation)
    return 0.5 * x * (1.0 + jax.lax.erf(x * _INV_SQRT2))


def _encoder_block_kernel(x_ref, vec_ref, mat_ref, wo_ref, o_ref, *,
                          S, Bt, E, F, H, r_qkv, r_c1, r_c2, r_rp):
    D = E // H
    R = Bt * S
    bf16 = jnp.bfloat16
    E16 = _round_up(E, 16)           # per-tap row stride of conv1 weights
    F16 = _round_up(F, 16)           # per-tap row stride of conv2 weights
    Nq = _round_up(3 * E, 128)       # padded (lane-dense) QKV output width
    Nf = _round_up(F, 128)           # padded (lane-dense) conv/proj output width
    scale = 1.0 / float(D) ** 0.5

    def vec(i, n):                   # (1, n) f32 row of the vector slab
        return vec_ref[i:i + 1, 0:n]

    x = x_ref[...].reshape(R, E)     # fold the Bt batch segments into rows

    # ---- pre-norm multi-head self-attention (fused QKV projection) ---------
    xn = _layernorm(x, vec(_V_N1W, E), vec(_V_N1B, E))
    qkv = jnp.dot(xn.astype(bf16), mat_ref[r_qkv:r_qkv + E, 0:Nq],
                  preferred_element_type=jnp.float32) + vec(_V_BQKV, Nq)
    qkv = qkv.astype(bf16)                          # single hoisted cast
    q_all = qkv[:, 0:E]
    k_all = qkv[:, E:2 * E]
    v_all = qkv[:, 2 * E:3 * E]

    def _softmax_last(s):
        s = s - jnp.max(s, axis=-1, keepdims=True)
        p = jnp.exp(s)
        return p * pl.reciprocal(jnp.sum(p, axis=-1, keepdims=True), approx=True)

    acc = jnp.zeros((R, E), jnp.float32)
    for h in range(H):               # small static head loop; per-head tensors
        sl = slice(h * D, (h + 1) * D)
        qh, kh, vh = q_all[:, sl], k_all[:, sl], v_all[:, sl]       # (R, D)
        if Bt == 1:
            # single batch segment in this tile -> plain 2-D (S, S) attention
            s = jnp.einsum("qd,kd->qk", qh, kh,
                           preferred_element_type=jnp.float32) * scale
            p = _softmax_last(s).astype(bf16)
            ctx = jnp.dot(p, vh, preferred_element_type=jnp.float32)  # (R, D)
        else:
            # per-batch block-diagonal attention via a batched einsum:
            # (Bt, S, S) scores instead of a masked (Bt*S, Bt*S) matrix.
            qb = qh.reshape(Bt, S, D)
            kb = kh.reshape(Bt, S, D)
            vb = vh.reshape(Bt, S, D)
            s = jnp.einsum("bqd,bkd->bqk", qb, kb,
                           preferred_element_type=jnp.float32) * scale
            p = _softmax_last(s).astype(bf16)
            ctx = jnp.einsum("bqk,bkd->bqd", p, vb,
                             preferred_element_type=jnp.float32).reshape(R, D)
        # fold head context back through the per-head block of W_out
        acc = acc + jnp.dot(ctx.astype(bf16), wo_ref[h],
                            preferred_element_type=jnp.float32)
    x1 = x + acc + vec(_V_BO, E)                    # residual_pre_cnn, (R, E)

    # ---- CNN pre-network: Conv1d(k=3, pad=1) as 3 accumulating matmuls ------
    x2 = _layernorm(x1, vec(_V_N2W, E), vec(_V_N2B, E))

    row = jax.lax.broadcasted_iota(jnp.int32, (R, 1), 0)
    first_row = (row % S) == 0
    last_row = (row % S) == (S - 1)

    def shifts(z):                   # z[s-1] / z[s+1] per segment, 0 at edges
        prev = jnp.where(first_row, 0.0, pltpu.roll(z, 1, 0))
        nxt = jnp.where(last_row, 0.0, pltpu.roll(z, R - 1, 0))
        return prev, nxt

    x2p, x2n = shifts(x2)

    def w_c1(t):
        r0 = r_c1 + t * E16
        return mat_ref[r0:r0 + E, 0:Nf]

    h1 = (jnp.dot(x2p.astype(bf16), w_c1(0), preferred_element_type=jnp.float32)
          + jnp.dot(x2.astype(bf16), w_c1(1), preferred_element_type=jnp.float32)
          + jnp.dot(x2n.astype(bf16), w_c1(2), preferred_element_type=jnp.float32)
          + vec(_V_C1B, Nf))                                          # (R, Nf)
    g = _gelu_exact(h1[:, 0:F])                                       # (R, F)

    gp, gn = shifts(g)

    def w_c2(t):
        r0 = r_c2 + t * F16
        return mat_ref[r0:r0 + F, 0:Nf]

    h2 = (jnp.dot(gp.astype(bf16), w_c2(0), preferred_element_type=jnp.float32)
          + jnp.dot(g.astype(bf16), w_c2(1), preferred_element_type=jnp.float32)
          + jnp.dot(gn.astype(bf16), w_c2(2), preferred_element_type=jnp.float32)
          + vec(_V_C2B, Nf))                                          # (R, Nf)

    # ---- 1x1-conv residual projection + final LayerNorm over F --------------
    r = jnp.dot(x1.astype(bf16), mat_ref[r_rp:r_rp + E, 0:Nf],
                preferred_element_type=jnp.float32) + vec(_V_RPB, Nf)
    y = _layernorm((r + h2)[:, 0:F], vec(_V_FNW, F), vec(_V_FNB, F))  # (R, F)

    # one lane-dense (Bt, S, F) store per grid step
    o_ref[...] = y.reshape(Bt, S, F).astype(o_ref.dtype)


def _pack_params(p, E, F_, H):
    """Pack all weights into 2 slabs + a per-head Wo tensor (kernel-ready)."""
    D = E // H
    bf16 = jnp.bfloat16
    E16, F16 = _round_up(E, 16), _round_up(F_, 16)
    lanes = _round_up(max(3 * E, E, F_), 128)       # zero-padded to 128 lanes

    # bf16 matrix slab: 16-row-aligned blocks, per-tap conv weights
    r_qkv = 0
    r_c1 = r_qkv + E16
    r_c2 = r_c1 + 3 * E16
    r_rp = r_c2 + 3 * F16
    mrows = _round_up(r_rp + E16, 16)
    mat = jnp.zeros((mrows, lanes), bf16)
    wqkv = jnp.concatenate([p["wq"].T, p["wk"].T, p["wv"].T], axis=1)   # (E, 3E)
    mat = mat.at[r_qkv:r_qkv + E, 0:3 * E].set(wqkv.astype(bf16))
    for t in range(3):
        mat = mat.at[r_c1 + t * E16:r_c1 + t * E16 + E, 0:F_].set(
            p["c1_w"][:, :, t].T.astype(bf16))                          # (E, F)
        mat = mat.at[r_c2 + t * F16:r_c2 + t * F16 + F_, 0:F_].set(
            p["c2_w"][:, :, t].T.astype(bf16))                          # (F, F)
    mat = mat.at[r_rp:r_rp + E, 0:F_].set(p["rp_w"][:, :, 0].T.astype(bf16))

    wo_heads = p["wo"].T.reshape(H, D, E).astype(bf16)                  # (H, D, E)

    # f32 vector slab: one zero-padded row per LN weight / bias vector
    vrows = _round_up(_N_VEC, 8)
    vecs = [None] * _N_VEC
    vecs[_V_N1W], vecs[_V_N1B] = p["n1_w"], p["n1_b"]
    vecs[_V_BQKV] = jnp.concatenate([p["bq"], p["bk"], p["bv"]], axis=0)
    vecs[_V_BO] = p["bo"]
    vecs[_V_N2W], vecs[_V_N2B] = p["n2_w"], p["n2_b"]
    vecs[_V_C1B], vecs[_V_C2B], vecs[_V_RPB] = p["c1_b"], p["c2_b"], p["rp_b"]
    vecs[_V_FNW], vecs[_V_FNB] = p["fn_w"], p["fn_b"]
    vec_slab = jnp.zeros((vrows, lanes), jnp.float32)
    for i, v in enumerate(vecs):
        vec_slab = vec_slab.at[i, : v.shape[0]].set(v.astype(jnp.float32))

    offs = {"qkv": r_qkv, "c1": r_c1, "c2": r_c2, "rp": r_rp}
    return vec_slab, mat, wo_heads, offs


def encoder_block_pallas(x, p, *, num_heads, batch_tile=None):
    B, S, E = x.shape
    F_ = p["c1_b"].shape[0]
    H = num_heads

    if batch_tile is None:
        # largest divisor of B with a modest row tile AND >= 2 grid steps
        # (v7x: two TensorCores need >= 2 "parallel" steps to both be busy).
        max_bt = B if B < 2 else B // 2
        batch_tile = 1
        for bt in range(1, max_bt + 1):
            if B % bt == 0 and bt * S <= 512:
                batch_tile = bt
    Bt = batch_tile
    assert B % Bt == 0, (B, Bt)

    vec_slab, mat_slab, wo_heads, offs = _pack_params(p, E, F_, H)

    kernel = functools.partial(
        _encoder_block_kernel, S=S, Bt=Bt, E=E, F=F_, H=H,
        r_qkv=offs["qkv"], r_c1=offs["c1"], r_c2=offs["c2"], r_rp=offs["rp"])

    # VMEM budget: double-buffered io blocks + weight slabs + activation room.
    lanes = vec_slab.shape[1]
    weight_bytes = vec_slab.size * 4 + mat_slab.size * 2 + wo_heads.size * 2
    io_bytes = 2 * Bt * S * (E + F_) * 4
    act_bytes = 32 * Bt * S * lanes * 4
    est = 2 * (weight_bytes + io_bytes) + act_bytes
    vmem_limit = int(min(max(est, 32 << 20), 64 << 20))

    out_bsf = pl.pallas_call(
        kernel,
        out_shape=jax.ShapeDtypeStruct((B, S, F_), x.dtype),
        grid=(B // Bt,),
        in_specs=[
            pl.BlockSpec((Bt, S, E), lambda i: (i, 0, 0)),
            pl.BlockSpec(vec_slab.shape, lambda i: (0, 0)),
            pl.BlockSpec(mat_slab.shape, lambda i: (0, 0)),
            pl.BlockSpec(wo_heads.shape, lambda i: (0, 0, 0)),
        ],
        out_specs=pl.BlockSpec((Bt, S, F_), lambda i: (i, 0, 0)),
        compiler_params=pltpu.CompilerParams(
            dimension_semantics=("parallel",),      # shard batch over TCs
            vmem_limit_bytes=vmem_limit),
    )(x, vec_slab, mat_slab, wo_heads)              # lane-dense (B, S, F)

    # PyTorch layout (B, F, S) via a cheap wrapper transpose
    return jnp.transpose(out_bsf, (0, 2, 1))


def init_params(key, embed_dim, n_filters, ksize=3):
    E, F_ = embed_dim, n_filters
    ks = jax.random.split(key, 20)

    def rnd(i, shape, scale=0.1):
        return (scale * jax.random.normal(ks[i], shape)).astype(jnp.float32)

    return {
        "n1_w": 1.0 + rnd(0, (E,)), "n1_b": rnd(1, (E,)),
        "wq": rnd(2, (E, E)), "bq": rnd(3, (E,)),
        "wk": rnd(4, (E, E)), "bk": rnd(5, (E,)),
        "wv": rnd(6, (E, E)), "bv": rnd(7, (E,)),
        "wo": rnd(8, (E, E)), "bo": rnd(9, (E,)),
        "n2_w": 1.0 + rnd(10, (E,)), "n2_b": rnd(11, (E,)),
        "c1_w": rnd(12, (F_, E, ksize)), "c1_b": rnd(13, (F_,)),
        "c2_w": rnd(14, (F_, F_, ksize)), "c2_b": rnd(15, (F_,)),
        "rp_w": rnd(16, (F_, E, 1)), "rp_b": rnd(17, (F_,)),
        "fn_w": 1.0 + rnd(18, (F_,)), "fn_b": rnd(19, (F_,)),
    }


def encoder_block_reference(x, p, *, num_heads):
    """Plain-JAX mirror of the PyTorch forward (for verification)."""
    B, S, E = x.shape
    H, D = num_heads, E // num_heads

    def ln(z, w, b):
        mu = jnp.mean(z, axis=-1, keepdims=True)
        var = jnp.mean((z - mu) ** 2, axis=-1, keepdims=True)
        return (z - mu) / jnp.sqrt(var + _LN_EPS) * w + b

    xn = ln(x, p["n1_w"], p["n1_b"])
    q = xn @ p["wq"].T + p["bq"]
    k = xn @ p["wk"].T + p["bk"]
    v = xn @ p["wv"].T + p["bv"]
    qh = q.reshape(B, S, H, D).transpose(0, 2, 1, 3)
    kh = k.reshape(B, S, H, D).transpose(0, 2, 1, 3)
    vh = v.reshape(B, S, H, D).transpose(0, 2, 1, 3)
    scores = jnp.einsum("bhqd,bhkd->bhqk", qh, kh) / jnp.sqrt(float(D))
    probs = jax.nn.softmax(scores, axis=-1)
    ctx = jnp.einsum("bhqk,bhkd->bhqd", probs, vh).transpose(0, 2, 1, 3).reshape(B, S, E)
    attn = ctx @ p["wo"].T + p["bo"]

    x1 = x + attn
    x2 = ln(x1, p["n2_w"], p["n2_b"])

    def conv1d(z_ncw, w, b, pad):
        y = jax.lax.conv_general_dilated(
            z_ncw, w, window_strides=(1,), padding=[(pad, pad)],
            dimension_numbers=("NCH", "OIH", "NCH"))
        return y + b[None, :, None]

    h1 = conv1d(jnp.transpose(x2, (0, 2, 1)), p["c1_w"], p["c1_b"], pad=1)
    g = jax.nn.gelu(h1, approximate=False)
    h2 = conv1d(g, p["c2_w"], p["c2_b"], pad=1)
    rp = conv1d(jnp.transpose(x1, (0, 2, 1)), p["rp_w"], p["rp_b"], pad=0)
    x_out = rp + h2                                  # (B, F, S)
    y = ln(jnp.transpose(x_out, (0, 2, 1)), p["fn_w"], p["fn_b"])
    return jnp.transpose(y, (0, 2, 1))               # (B, F, S)


if __name__ == "__main__":
    B, S, E, H, F_ = 2, 8, 32, 4, 16   # batch, seq, embed_dim, heads, n_encoder_filters
    key = jax.random.PRNGKey(0)
    kx, kp = jax.random.split(key)
    x = jax.random.normal(kx, (B, S, E), dtype=jnp.float32)
    params = init_params(kp, E, F_)

    y = encoder_block_pallas(x, params, num_heads=H)
    y = jax.block_until_ready(y)

    y_ref = encoder_block_reference(x, params, num_heads=H)
    assert y.shape == (B, F_, S), y.shape
    # tolerance loosened intentionally: MXU operands are bf16 (f32 accumulation)
    # and softmax normalisation uses the approximate EUP reciprocal.
    if not jnp.allclose(y, y_ref, atol=5e-2, rtol=5e-2):
        raise AssertionError(
            f"mismatch vs reference, max abs err = {jnp.max(jnp.abs(y - y_ref))}")
    print("KERNEL_OK")
</pallas_src>

<mosaic_0001>
module attributes {stable_mosaic.version = 11 : i64} {
  func.func @_encoder_block_kernel(%arg0: i32, %arg1: memref<1x8x32xf32, #tpu.memory_space<vmem>>, %arg2: memref<16x128xf32, #tpu.memory_space<vmem>>, %arg3: memref<208x128xbf16, #tpu.memory_space<vmem>>, %arg4: memref<4x8x32xbf16, #tpu.memory_space<vmem>>, %arg5: memref<1x8x16xf32, #tpu.memory_space<vmem>>) attributes {dimension_semantics = [#tpu.dimension_semantics<parallel>], iteration_bounds = array<i64: 2>, scalar_prefetch = 0 : i64, scratch_operands = 0 : i64, tpu.core_type = #tpu.core_type<tc>, window_params = [{transform_indices = @transform_0, window_bounds = array<i64: 1, 8, 32>}, {pipeline_mode = #tpu.pipeline_mode<synchronous>, transform_indices = @transform_1, window_bounds = array<i64: 16, 128>}, {pipeline_mode = #tpu.pipeline_mode<synchronous>, transform_indices = @transform_2, window_bounds = array<i64: 208, 128>}, {pipeline_mode = #tpu.pipeline_mode<synchronous>, transform_indices = @transform_3, window_bounds = array<i64: 4, 8, 32>}, {transform_indices = @transform_4, window_bounds = array<i64: 1, 8, 16>}]} {
    %c0 = arith.constant 0 : index
    %c0_0 = arith.constant 0 : index
    %c0_1 = arith.constant 0 : index
    %0 = vector.load %arg1[%c0, %c0_0, %c0_1] : memref<1x8x32xf32, #tpu.memory_space<vmem>>, vector<1x8x32xf32>
    %1 = vector.shape_cast %0 : vector<1x8x32xf32> to vector<8x32xf32>
    %c0_2 = arith.constant 0 : index
    %c0_3 = arith.constant 0 : index
    %2 = vector.load %arg2[%c0_2, %c0_3] : memref<16x128xf32, #tpu.memory_space<vmem>>, vector<1x32xf32>
    %c1 = arith.constant 1 : index
    %c0_4 = arith.constant 0 : index
    %3 = vector.load %arg2[%c1, %c0_4] : memref<16x128xf32, #tpu.memory_space<vmem>>, vector<1x32xf32>
    %cst = arith.constant dense<0.000000e+00> : vector<8xf32>
    %4 = vector.multi_reduction <add>, %1, %cst [1] : vector<8x32xf32> to vector<8xf32>
    %5 = vector.shape_cast %4 : vector<8xf32> to vector<8x1xf32>
    %cst_5 = arith.constant 3.200000e+01 : f32
    %6 = vector.broadcast %cst_5 : f32 to vector<8x1xf32>
    %7 = arith.divf %5, %6 : vector<8x1xf32>
    %8 = vector.broadcast %7 : vector<8x1xf32> to vector<8x32xf32>
    %9 = arith.subf %1, %8 : vector<8x32xf32>
    %10 = arith.mulf %9, %9 : vector<8x32xf32>
    %cst_6 = arith.constant dense<0.000000e+00> : vector<8xf32>
    %11 = vector.multi_reduction <add>, %10, %cst_6 [1] : vector<8x32xf32> to vector<8xf32>
    %12 = vector.shape_cast %11 : vector<8xf32> to vector<8x1xf32>
    %cst_7 = arith.constant 3.200000e+01 : f32
    %13 = vector.broadcast %cst_7 : f32 to vector<8x1xf32>
    %14 = arith.divf %12, %13 : vector<8x1xf32>
    %cst_8 = arith.constant 9.99999974E-6 : f32
    %15 = vector.broadcast %cst_8 : f32 to vector<8x1xf32>
    %16 = arith.addf %14, %15 : vector<8x1xf32>
    %17 = math.rsqrt %16 : vector<8x1xf32>
    %18 = vector.broadcast %17 : vector<8x1xf32> to vector<8x32xf32>
    %19 = arith.mulf %9, %18 : vector<8x32xf32>
    %20 = vector.broadcast %2 : vector<1x32xf32> to vector<8x32xf32>
    %21 = arith.mulf %19, %20 : vector<8x32xf32>
    %22 = vector.broadcast %3 : vector<1x32xf32> to vector<8x32xf32>
    %23 = arith.addf %21, %22 : vector<8x32xf32>
    %24 = arith.truncf %23 : vector<8x32xf32> to vector<8x32xbf16>
    %c0_9 = arith.constant 0 : index
    %c0_10 = arith.constant 0 : index
    %25 = vector.load %arg3[%c0_9, %c0_10] : memref<208x128xbf16, #tpu.memory_space<vmem>>, vector<32x128xbf16>
    %cst_11 = arith.constant dense<0.000000e+00> : vector<8x128xf32>
    %26 = tpu.matmul %24, %25, %cst_11 {dimension_numbers = #tpu.dot_dimension_numbers<[1], [0], [0], [1], [0, 0, 1, 1], [], []>} : vector<8x32xbf16>, vector<32x128xbf16>, vector<8x128xf32> -> vector<8x128xf32>
    %c2 = arith.constant 2 : index
    %c0_12 = arith.constant 0 : index
    %27 = vector.load %arg2[%c2, %c0_12] : memref<16x128xf32, #tpu.memory_space<vmem>>, vector<1x128xf32>
    %28 = vector.broadcast %27 : vector<1x128xf32> to vector<8x128xf32>
    %29 = arith.addf %26, %28 : vector<8x128xf32>
    %30 = arith.truncf %29 : vector<8x128xf32> to vector<8x128xbf16>
    %31 = vector.extract_strided_slice %30 {offsets = [0, 0], sizes = [8, 32], strides = [1, 1]} : vector<8x128xbf16> to vector<8x32xbf16>
    %32 = vector.extract_strided_slice %30 {offsets = [0, 32], sizes = [8, 32], strides = [1, 1]} : vector<8x128xbf16> to vector<8x32xbf16>
    %33 = vector.extract_strided_slice %30 {offsets = [0, 64], sizes = [8, 32], strides = [1, 1]} : vector<8x128xbf16> to vector<8x32xbf16>
    %cst_13 = arith.constant 0.000000e+00 : f32
    %34 = vector.broadcast %cst_13 : f32 to vector<8x32xf32>
    %35 = vector.extract_strided_slice %31 {offsets = [0, 0], sizes = [8, 8], strides = [1, 1]} : vector<8x32xbf16> to vector<8x8xbf16>
    %36 = vector.extract_strided_slice %32 {offsets = [0, 0], sizes = [8, 8], strides = [1, 1]} : vector<8x32xbf16> to vector<8x8xbf16>
    %37 = vector.extract_strided_slice %33 {offsets = [0, 0], sizes = [8, 8], strides = [1, 1]} : vector<8x32xbf16> to vector<8x8xbf16>
    "tpu.trace_start"() <{level = 10 : i32, message = "qd,kd->qk"}> : () -> ()
    %cst_14 = arith.constant dense<0.000000e+00> : vector<8x8xf32>
    %38 = tpu.matmul %35, %36, %cst_14 {dimension_numbers = #tpu.dot_dimension_numbers<[1], [1], [0], [0], [0, 0, 1, 0], [], []>} : vector<8x8xbf16>, vector<8x8xbf16>, vector<8x8xf32> -> vector<8x8xf32>
    "tpu.trace_stop"() : () -> ()
    %cst_15 = arith.constant 0.353553385 : f32
    %39 = vector.broadcast %cst_15 : f32 to vector<8x8xf32>
    %40 = arith.mulf %38, %39 : vector<8x8xf32>
    %cst_16 = arith.constant dense<0xFF800000> : vector<8xf32>
    %41 = vector.multi_reduction <maximumf>, %40, %cst_16 [1] : vector<8x8xf32> to vector<8xf32>
    %42 = vector.shape_cast %41 : vector<8xf32> to vector<8x1xf32>
    %43 = vector.broadcast %42 : vector<8x1xf32> to vector<8x8xf32>
    %44 = arith.subf %40, %43 : vector<8x8xf32>
    %45 = math.exp %44 : vector<8x8xf32>
    %cst_17 = arith.constant dense<0.000000e+00> : vector<8xf32>
    %46 = vector.multi_reduction <add>, %45, %cst_17 [1] : vector<8x8xf32> to vector<8xf32>
    %47 = vector.shape_cast %46 : vector<8xf32> to vector<8x1xf32>
    %48 = tpu.reciprocal %47 {approx = true} : vector<8x1xf32> -> vector<8x1xf32>
    %49 = vector.broadcast %48 : vector<8x1xf32> to vector<8x8xf32>
    %50 = arith.mulf %45, %49 : vector<8x8xf32>
    %51 = arith.truncf %50 : vector<8x8xf32> to vector<8x8xbf16>
    %cst_18 = arith.constant dense<0.000000e+00> : vector<8x8xf32>
    %52 = tpu.matmul %51, %37, %cst_18 {dimension_numbers = #tpu.dot_dimension_numbers<[1], [0], [0], [1], [0, 0, 1, 1], [], []>} : vector<8x8xbf16>, vector<8x8xbf16>, vector<8x8xf32> -> vector<8x8xf32>
    %53 = arith.truncf %52 : vector<8x8xf32> to vector<8x8xbf16>
    %c0_19 = arith.constant 0 : index
    %c0_20 = arith.constant 0 : index
    %c0_21 = arith.constant 0 : index
    %54 = vector.load %arg4[%c0_19, %c0_20, %c0_21] : memref<4x8x32xbf16, #tpu.memory_space<vmem>>, vector<1x8x32xbf16>
    %55 = vector.shape_cast %54 : vector<1x8x32xbf16> to vector<8x32xbf16>
    %cst_22 = arith.constant dense<0.000000e+00> : vector<8x32xf32>
    %56 = tpu.matmul %53, %55, %cst_22 {dimension_numbers = #tpu.dot_dimension_numbers<[1], [0], [0], [1], [0, 0, 1, 1], [], []>} : vector<8x8xbf16>, vector<8x32xbf16>, vector<8x32xf32> -> vector<8x32xf32>
    %57 = arith.addf %34, %56 : vector<8x32xf32>
    %58 = vector.extract_strided_slice %31 {offsets = [0, 8], sizes = [8, 8], strides = [1, 1]} : vector<8x32xbf16> to vector<8x8xbf16>
    %59 = vector.extract_strided_slice %32 {offsets = [0, 8], sizes = [8, 8], strides = [1, 1]} : vector<8x32xbf16> to vector<8x8xbf16>
    %60 = vector.extract_strided_slice %33 {offsets = [0, 8], sizes = [8, 8], strides = [1, 1]} : vector<8x32xbf16> to vector<8x8xbf16>
    "tpu.trace_start"() <{level = 10 : i32, message = "qd,kd->qk"}> : () -> ()
    %cst_23 = arith.constant dense<0.000000e+00> : vector<8x8xf32>
    %61 = tpu.matmul %58, %59, %cst_23 {dimension_numbers = #tpu.dot_dimension_numbers<[1], [1], [0], [0], [0, 0, 1, 0], [], []>} : vector<8x8xbf16>, vector<8x8xbf16>, vector<8x8xf32> -> vector<8x8xf32>
    "tpu.trace_stop"() : () -> ()
    %cst_24 = arith.constant 0.353553385 : f32
    %62 = vector.broadcast %cst_24 : f32 to vector<8x8xf32>
    %63 = arith.mulf %61, %62 : vector<8x8xf32>
    %cst_25 = arith.constant dense<0xFF800000> : vector<8xf32>
    %64 = vector.multi_reduction <maximumf>, %63, %cst_25 [1] : vector<8x8xf32> to vector<8xf32>
    %65 = vector.shape_cast %64 : vector<8xf32> to vector<8x1xf32>
    %66 = vector.broadcast %65 : vector<8x1xf32> to vector<8x8xf32>
    %67 = arith.subf %63, %66 : vector<8x8xf32>
    %68 = math.exp %67 : vector<8x8xf32>
    %cst_26 = arith.constant dense<0.000000e+00> : vector<8xf32>
    %69 = vector.multi_reduction <add>, %68, %cst_26 [1] : vector<8x8xf32> to vector<8xf32>
    %70 = vector.shape_cast %69 : vector<8xf32> to vector<8x1xf32>
    %71 = tpu.reciprocal %70 {approx = true} : vector<8x1xf32> -> vector<8x1xf32>
    %72 = vector.broadcast %71 : vector<8x1xf32> to vector<8x8xf32>
    %73 = arith.mulf %68, %72 : vector<8x8xf32>
    %74 = arith.truncf %73 : vector<8x8xf32> to vector<8x8xbf16>
    %cst_27 = arith.constant dense<0.000000e+00> : vector<8x8xf32>
    %75 = tpu.matmul %74, %60, %cst_27 {dimension_numbers = #tpu.dot_dimension_numbers<[1], [0], [0], [1], [0, 0, 1, 1], [], []>} : vector<8x8xbf16>, vector<8x8xbf16>, vector<8x8xf32> -> vector<8x8xf32>
    %76 = arith.truncf %75 : vector<8x8xf32> to vector<8x8xbf16>
    %c1_28 = arith.constant 1 : index
    %c0_29 = arith.constant 0 : index
    %c0_30 = arith.constant 0 : index
    %77 = vector.load %arg4[%c1_28, %c0_29, %c0_30] : memref<4x8x32xbf16, #tpu.memory_space<vmem>>, vector<1x8x32xbf16>
    %78 = vector.shape_cast %77 : vector<1x8x32xbf16> to vector<8x32xbf16>
    %cst_31 = arith.constant dense<0.000000e+00> : vector<8x32xf32>
    %79 = tpu.matmul %76, %78, %cst_31 {dimension_numbers = #tpu.dot_dimension_numbers<[1], [0], [0], [1], [0, 0, 1, 1], [], []>} : vector<8x8xbf16>, vector<8x32xbf16>, vector<8x32xf32> -> vector<8x32xf32>
    %80 = arith.addf %57, %79 : vector<8x32xf32>
    %81 = vector.extract_strided_slice %31 {offsets = [0, 16], sizes = [8, 8], strides = [1, 1]} : vector<8x32xbf16> to vector<8x8xbf16>
    %82 = vector.extract_strided_slice %32 {offsets = [0, 16], sizes = [8, 8], strides = [1, 1]} : vector<8x32xbf16> to vector<8x8xbf16>
    %83 = vector.extract_strided_slice %33 {offsets = [0, 16], sizes = [8, 8], strides = [1, 1]} : vector<8x32xbf16> to vector<8x8xbf16>
    "tpu.trace_start"() <{level = 10 : i32, message = "qd,kd->qk"}> : () -> ()
    %cst_32 = arith.constant dense<0.000000e+00> : vector<8x8xf32>
    %84 = tpu.matmul %81, %82, %cst_32 {dimension_numbers = #tpu.dot_dimension_numbers<[1], [1], [0], [0], [0, 0, 1, 0], [], []>} : vector<8x8xbf16>, vector<8x8xbf16>, vector<8x8xf32> -> vector<8x8xf32>
    "tpu.trace_stop"() : () -> ()
    %cst_33 = arith.constant 0.353553385 : f32
    %85 = vector.broadcast %cst_33 : f32 to vector<8x8xf32>
    %86 = arith.mulf %84, %85 : vector<8x8xf32>
    %cst_34 = arith.constant dense<0xFF800000> : vector<8xf32>
    %87 = vector.multi_reduction <maximumf>, %86, %cst_34 [1] : vector<8x8xf32> to vector<8xf32>
    %88 = vector.shape_cast %87 : vector<8xf32> to vector<8x1xf32>
    %89 = vector.broadcast %88 : vector<8x1xf32> to vector<8x8xf32>
    %90 = arith.subf %86, %89 : vector<8x8xf32>
    %91 = math.exp %90 : vector<8x8xf32>
    %cst_35 = arith.constant dense<0.000000e+00> : vector<8xf32>
    %92 = vector.multi_reduction <add>, %91, %cst_35 [1] : vector<8x8xf32> to vector<8xf32>
    %93 = vector.shape_cast %92 : vector<8xf32> to vector<8x1xf32>
    %94 = tpu.reciprocal %93 {approx = true} : vector<8x1xf32> -> vector<8x1xf32>
    %95 = vector.broadcast %94 : vector<8x1xf32> to vector<8x8xf32>
    %96 = arith.mulf %91, %95 : vector<8x8xf32>
    %97 = arith.truncf %96 : vector<8x8xf32> to vector<8x8xbf16>
    %cst_36 = arith.constant dense<0.000000e+00> : vector<8x8xf32>
    %98 = tpu.matmul %97, %83, %cst_36 {dimension_numbers = #tpu.dot_dimension_numbers<[1], [0], [0], [1], [0, 0, 1, 1], [], []>} : vector<8x8xbf16>, vector<8x8xbf16>, vector<8x8xf32> -> vector<8x8xf32>
    %99 = arith.truncf %98 : vector<8x8xf32> to vector<8x8xbf16>
    %c2_37 = arith.constant 2 : index
    %c0_38 = arith.constant 0 : index
    %c0_39 = arith.constant 0 : index
    %100 = vector.load %arg4[%c2_37, %c0_38, %c0_39] : memref<4x8x32xbf16, #tpu.memory_space<vmem>>, vector<1x8x32xbf16>
    %101 = vector.shape_cast %100 : vector<1x8x32xbf16> to vector<8x32xbf16>
    %cst_40 = arith.constant dense<0.000000e+00> : vector<8x32xf32>
    %102 = tpu.matmul %99, %101, %cst_40 {dimension_numbers = #tpu.dot_dimension_numbers<[1], [0], [0], [1], [0, 0, 1, 1], [], []>} : vector<8x8xbf16>, vector<8x32xbf16>, vector<8x32xf32> -> vector<8x32xf32>
    %103 = arith.addf %80, %102 : vector<8x32xf32>
    %104 = vector.extract_strided_slice %31 {offsets = [0, 24], sizes = [8, 8], strides = [1, 1]} : vector<8x32xbf16> to vector<8x8xbf16>
    %105 = vector.extract_strided_slice %32 {offsets = [0, 24], sizes = [8, 8], strides = [1, 1]} : vector<8x32xbf16> to vector<8x8xbf16>
    %106 = vector.extract_strided_slice %33 {offsets = [0, 24], sizes = [8, 8], strides = [1, 1]} : vector<8x32xbf16> to vector<8x8xbf16>
    "tpu.trace_start"() <{level = 10 : i32, message = "qd,kd->qk"}> : () -> ()
    %cst_41 = arith.constant dense<0.000000e+00> : vector<8x8xf32>
    %107 = tpu.matmul %104, %105, %cst_41 {dimension_numbers = #tpu.dot_dimension_numbers<[1], [1], [0], [0], [0, 0, 1, 0], [], []>} : vector<8x8xbf16>, vector<8x8xbf16>, vector<8x8xf32> -> vector<8x8xf32>
    "tpu.trace_stop"() : () -> ()
    %cst_42 = arith.constant 0.353553385 : f32
    %108 = vector.broadcast %cst_42 : f32 to vector<8x8xf32>
    %109 = arith.mulf %107, %108 : vector<8x8xf32>
    %cst_43 = arith.constant dense<0xFF800000> : vector<8xf32>
    %110 = vector.multi_reduction <maximumf>, %109, %cst_43 [1] : vector<8x8xf32> to vector<8xf32>
    %111 = vector.shape_cast %110 : vector<8xf32> to vector<8x1xf32>
    %112 = vector.broadcast %111 : vector<8x1xf32> to vector<8x8xf32>
    %113 = arith.subf %109, %112 : vector<8x8xf32>
    %114 = math.exp %113 : vector<8x8xf32>
    %cst_44 = arith.constant dense<0.000000e+00> : vector<8xf32>
    %115 = vector.multi_reduction <add>, %114, %cst_44 [1] : vector<8x8xf32> to vector<8xf32>
    %116 = vector.shape_cast %115 : vector<8xf32> to vector<8x1xf32>
    %117 = tpu.reciprocal %116 {approx = true} : vector<8x1xf32> -> vector<8x1xf32>
    %118 = vector.broadcast %117 : vector<8x1xf32> to vector<8x8xf32>
    %119 = arith.mulf %114, %118 : vector<8x8xf32>
    %120 = arith.truncf %119 : vector<8x8xf32> to vector<8x8xbf16>
    %cst_45 = arith.constant dense<0.000000e+00> : vector<8x8xf32>
    %121 = tpu.matmul %120, %106, %cst_45 {dimension_numbers = #tpu.dot_dimension_numbers<[1], [0], [0], [1], [0, 0, 1, 1], [], []>} : vector<8x8xbf16>, vector<8x8xbf16>, vector<8x8xf32> -> vector<8x8xf32>
    %122 = arith.truncf %121 : vector<8x8xf32> to vector<8x8xbf16>
    %c3 = arith.constant 3 : index
    %c0_46 = arith.constant 0 : index
    %c0_47 = arith.constant 0 : index
    %123 = vector.load %arg4[%c3, %c0_46, %c0_47] : memref<4x8x32xbf16, #tpu.memory_space<vmem>>, vector<1x8x32xbf16>
    %124 = vector.shape_cast %123 : vector<1x8x32xbf16> to vector<8x32xbf16>
    %cst_48 = arith.constant dense<0.000000e+00> : vector<8x32xf32>
    %125 = tpu.matmul %122, %124, %cst_48 {dimension_numbers = #tpu.dot_dimension_numbers<[1], [0], [0], [1], [0, 0, 1, 1], [], []>} : vector<8x8xbf16>, vector<8x32xbf16>, vector<8x32xf32> -> vector<8x32xf32>
    %126 = arith.addf %103, %125 : vector<8x32xf32>
    %127 = arith.addf %1, %126 : vector<8x32xf32>
    %c3_49 = arith.constant 3 : index
    %c0_50 = arith.constant 0 : index
    %128 = vector.load %arg2[%c3_49, %c0_50] : memref<16x128xf32, #tpu.memory_space<vmem>>, vector<1x32xf32>
    %129 = vector.broadcast %128 : vector<1x32xf32> to vector<8x32xf32>
    %130 = arith.addf %127, %129 : vector<8x32xf32>
    %c4 = arith.constant 4 : index
    %c0_51 = arith.constant 0 : index
    %131 = vector.load %arg2[%c4, %c0_51] : memref<16x128xf32, #tpu.memory_space<vmem>>, vector<1x32xf32>
    %c5 = arith.constant 5 : index
    %c0_52 = arith.constant 0 : index
    %132 = vector.load %arg2[%c5, %c0_52] : memref<16x128xf32, #tpu.memory_space<vmem>>, vector<1x32xf32>
    %cst_53 = arith.constant dense<0.000000e+00> : vector<8xf32>
    %133 = vector.multi_reduction <add>, %130, %cst_53 [1] : vector<8x32xf32> to vector<8xf32>
    %134 = vector.shape_cast %133 : vector<8xf32> to vector<8x1xf32>
    %cst_54 = arith.constant 3.200000e+01 : f32
    %135 = vector.broadcast %cst_54 : f32 to vector<8x1xf32>
    %136 = arith.divf %134, %135 : vector<8x1xf32>
    %137 = vector.broadcast %136 : vector<8x1xf32> to vector<8x32xf32>
    %138 = arith.subf %130, %137 : vector<8x32xf32>
    %139 = arith.mulf %138, %138 : vector<8x32xf32>
    %cst_55 = arith.constant dense<0.000000e+00> : vector<8xf32>
    %140 = vector.multi_reduction <add>, %139, %cst_55 [1] : vector<8x32xf32> to vector<8xf32>
    %141 = vector.shape_cast %140 : vector<8xf32> to vector<8x1xf32>
    %cst_56 = arith.constant 3.200000e+01 : f32
    %142 = vector.broadcast %cst_56 : f32 to vector<8x1xf32>
    %143 = arith.divf %141, %142 : vector<8x1xf32>
    %cst_57 = arith.constant 9.99999974E-6 : f32
    %144 = vector.broadcast %cst_57 : f32 to vector<8x1xf32>
    %145 = arith.addf %143, %144 : vector<8x1xf32>
    %146 = math.rsqrt %145 : vector<8x1xf32>
    %147 = vector.broadcast %146 : vector<8x1xf32> to vector<8x32xf32>
    %148 = arith.mulf %138, %147 : vector<8x32xf32>
    %149 = vector.broadcast %131 : vector<1x32xf32> to vector<8x32xf32>
    %150 = arith.mulf %148, %149 : vector<8x32xf32>
    %151 = vector.broadcast %132 : vector<1x32xf32> to vector<8x32xf32>
    %152 = arith.addf %150, %151 : vector<8x32xf32>
    %153 = tpu.iota {dimensions = array<i32: 0>} : vector<8x1xi32>
    %c8_i32 = arith.constant 8 : i32
    %c0_i32 = arith.constant 0 : i32
    %154 = arith.cmpi eq, %c8_i32, %c0_i32 : i32
    %c1_i32 = arith.constant 1 : i32
    %155 = arith.select %154, %c1_i32, %c8_i32 : i32
    %156 = vector.broadcast %155 : i32 to vector<8x1xi32>
    %157 = arith.remsi %153, %156 : vector<8x1xi32>
    %c0_i32_58 = arith.constant 0 : i32
    %158 = vector.broadcast %c0_i32_58 : i32 to vector<8x1xi32>
    %159 = arith.cmpi ne, %157, %158 : vector<8x1xi32>
    %c0_i32_59 = arith.constant 0 : i32
    %160 = vector.broadcast %c0_i32_59 : i32 to vector<8x1xi32>
    %161 = arith.cmpi slt, %157, %160 : vector<8x1xi32>
    %c0_i32_60 = arith.constant 0 : i32
    %162 = arith.cmpi slt, %155, %c0_i32_60 : i32
    %163 = vector.broadcast %162 : i1 to vector<8x1xi1>
    %164 = vector.broadcast %163 : vector<8x1xi1> to vector<8x1xi1>
    %165 = arith.xori %161, %164 : vector<8x1xi1>
    %166 = arith.andi %165, %159 : vector<8x1xi1>
    %167 = vector.broadcast %155 : i32 to vector<8x1xi32>
    %168 = arith.addi %157, %167 : vector<8x1xi32>
    %169 = arith.select %166, %168, %157 : vector<8x1xi1>, vector<8x1xi32>
    %c0_i32_61 = arith.constant 0 : i32
    %170 = vector.broadcast %c0_i32_61 : i32 to vector<8x1xi32>
    %171 = arith.cmpi eq, %169, %170 : vector<8x1xi32>
    %c8_i32_62 = arith.constant 8 : i32
    %c0_i32_63 = arith.constant 0 : i32
    %172 = arith.cmpi eq, %c8_i32_62, %c0_i32_63 : i32
    %c1_i32_64 = arith.constant 1 : i32
    %173 = arith.select %172, %c1_i32_64, %c8_i32_62 : i32
    %174 = vector.broadcast %173 : i32 to vector<8x1xi32>
    %175 = arith.remsi %153, %174 : vector<8x1xi32>
    %c0_i32_65 = arith.constant 0 : i32
    %176 = vector.broadcast %c0_i32_65 : i32 to vector<8x1xi32>
    %177 = arith.cmpi ne, %175, %176 : vector<8x1xi32>
    %c0_i32_66 = arith.constant 0 : i32
    %178 = vector.broadcast %c0_i32_66 : i32 to vector<8x1xi32>
    %179 = arith.cmpi slt, %175, %178 : vector<8x1xi32>
    %c0_i32_67 = arith.constant 0 : i32
    %180 = arith.cmpi slt, %173, %c0_i32_67 : i32
    %181 = vector.broadcast %180 : i1 to vector<8x1xi1>
    %182 = vector.broadcast %181 : vector<8x1xi1> to vector<8x1xi1>
    %183 = arith.xori %179, %182 : vector<8x1xi1>
    %184 = arith.andi %183, %177 : vector<8x1xi1>
    %185 = vector.broadcast %173 : i32 to vector<8x1xi32>
    %186 = arith.addi %175, %185 : vector<8x1xi32>
    %187 = arith.select %184, %186, %175 : vector<8x1xi1>, vector<8x1xi32>
    %c7_i32 = arith.constant 7 : i32
    %188 = vector.broadcast %c7_i32 : i32 to vector<8x1xi32>
    %189 = arith.cmpi eq, %187, %188 : vector<8x1xi32>
    %c1_i32_68 = arith.constant 1 : i32
    %190 = tpu.dynamic_rotate %152 by %c1_i32_68 dim 0 : vector<8x32xf32>, i32 -> vector<8x32xf32>
    %cst_69 = arith.constant 0.000000e+00 : f32
    %191 = vector.shape_cast %171 : vector<8x1xi1> to vector<8x1xi1>
    %192 = vector.broadcast %191 : vector<8x1xi1> to vector<8x32xi1>
    %193 = vector.broadcast %cst_69 : f32 to vector<8x32xf32>
    %194 = arith.select %192, %193, %190 : vector<8x32xi1>, vector<8x32xf32>
    %c7_i32_70 = arith.constant 7 : i32
    %195 = tpu.dynamic_rotate %152 by %c7_i32_70 dim 0 : vector<8x32xf32>, i32 -> vector<8x32xf32>
    %cst_71 = arith.constant 0.000000e+00 : f32
    %196 = vector.shape_cast %189 : vector<8x1xi1> to vector<8x1xi1>
    %197 = vector.broadcast %196 : vector<8x1xi1> to vector<8x32xi1>
    %198 = vector.broadcast %cst_71 : f32 to vector<8x32xf32>
    %199 = arith.select %197, %198, %195 : vector<8x32xi1>, vector<8x32xf32>
    %200 = arith.truncf %194 : vector<8x32xf32> to vector<8x32xbf16>
    %c32 = arith.constant 32 : index
    %c0_72 = arith.constant 0 : index
    %201 = vector.load %arg3[%c32, %c0_72] : memref<208x128xbf16, #tpu.memory_space<vmem>>, vector<32x128xbf16>
    %cst_73 = arith.constant dense<0.000000e+00> : vector<8x128xf32>
    %202 = tpu.matmul %200, %201, %cst_73 {dimension_numbers = #tpu.dot_dimension_numbers<[1], [0], [0], [1], [0, 0, 1, 1], [], []>} : vector<8x32xbf16>, vector<32x128xbf16>, vector<8x128xf32> -> vector<8x128xf32>
    %203 = arith.truncf %152 : vector<8x32xf32> to vector<8x32xbf16>
    %c64 = arith.constant 64 : index
    %c0_74 = arith.constant 0 : index
    %204 = vector.load %arg3[%c64, %c0_74] : memref<208x128xbf16, #tpu.memory_space<vmem>>, vector<32x128xbf16>
    %cst_75 = arith.constant dense<0.000000e+00> : vector<8x128xf32>
    %205 = tpu.matmul %203, %204, %cst_75 {dimension_numbers = #tpu.dot_dimension_numbers<[1], [0], [0], [1], [0, 0, 1, 1], [], []>} : vector<8x32xbf16>, vector<32x128xbf16>, vector<8x128xf32> -> vector<8x128xf32>
    %206 = arith.addf %202, %205 : vector<8x128xf32>
    %207 = arith.truncf %199 : vector<8x32xf32> to vector<8x32xbf16>
    %c96 = arith.constant 96 : index
    %c0_76 = arith.constant 0 : index
    %208 = vector.load %arg3[%c96, %c0_76] : memref<208x128xbf16, #tpu.memory_space<vmem>>, vector<32x128xbf16>
    %cst_77 = arith.constant dense<0.000000e+00> : vector<8x128xf32>
    %209 = tpu.matmul %207, %208, %cst_77 {dimension_numbers = #tpu.dot_dimension_numbers<[1], [0], [0], [1], [0, 0, 1, 1], [], []>} : vector<8x32xbf16>, vector<32x128xbf16>, vector<8x128xf32> -> vector<8x128xf32>
    %210 = arith.addf %206, %209 : vector<8x128xf32>
    %c6 = arith.constant 6 : index
    %c0_78 = arith.constant 0 : index
    %211 = vector.load %arg2[%c6, %c0_78] : memref<16x128xf32, #tpu.memory_space<vmem>>, vector<1x128xf32>
    %212 = vector.broadcast %211 : vector<1x128xf32> to vector<8x128xf32>
    %213 = arith.addf %210, %212 : vector<8x128xf32>
    %214 = vector.extract_strided_slice %213 {offsets = [0, 0], sizes = [8, 16], strides = [1, 1]} : vector<8x128xf32> to vector<8x16xf32>
    %cst_79 = arith.constant 5.000000e-01 : f32
    %215 = vector.broadcast %cst_79 : f32 to vector<8x16xf32>
    %216 = arith.mulf %215, %214 : vector<8x16xf32>
    %cst_80 = arith.constant 0.707106769 : f32
    %217 = vector.broadcast %cst_80 : f32 to vector<8x16xf32>
    %218 = arith.mulf %214, %217 : vector<8x16xf32>
    %219 = math.erf %218 : vector<8x16xf32>
    %cst_81 = arith.constant 1.000000e+00 : f32
    %220 = vector.broadcast %cst_81 : f32 to vector<8x16xf32>
    %221 = arith.addf %220, %219 : vector<8x16xf32>
    %222 = arith.mulf %216, %221 : vector<8x16xf32>
    %c1_i32_82 = arith.constant 1 : i32
    %223 = tpu.dynamic_rotate %222 by %c1_i32_82 dim 0 : vector<8x16xf32>, i32 -> vector<8x16xf32>
    %cst_83 = arith.constant 0.000000e+00 : f32
    %224 = vector.shape_cast %171 : vector<8x1xi1> to vector<8x1xi1>
    %225 = vector.broadcast %224 : vector<8x1xi1> to vector<8x16xi1>
    %226 = vector.broadcast %cst_83 : f32 to vector<8x16xf32>
    %227 = arith.select %225, %226, %223 : vector<8x16xi1>, vector<8x16xf32>
    %c7_i32_84 = arith.constant 7 : i32
    %228 = tpu.dynamic_rotate %222 by %c7_i32_84 dim 0 : vector<8x16xf32>, i32 -> vector<8x16xf32>
    %cst_85 = arith.constant 0.000000e+00 : f32
    %229 = vector.shape_cast %189 : vector<8x1xi1> to vector<8x1xi1>
    %230 = vector.broadcast %229 : vector<8x1xi1> to vector<8x16xi1>
    %231 = vector.broadcast %cst_85 : f32 to vector<8x16xf32>
    %232 = arith.select %230, %231, %228 : vector<8x16xi1>, vector<8x16xf32>
    %233 = arith.truncf %227 : vector<8x16xf32> to vector<8x16xbf16>
    %c128 = arith.constant 128 : index
    %c0_86 = arith.constant 0 : index
    %234 = vector.load %arg3[%c128, %c0_86] : memref<208x128xbf16, #tpu.memory_space<vmem>>, vector<16x128xbf16>
    %cst_87 = arith.constant dense<0.000000e+00> : vector<8x128xf32>
    %235 = tpu.matmul %233, %234, %cst_87 {dimension_numbers = #tpu.dot_dimension_numbers<[1], [0], [0], [1], [0, 0, 1, 1], [], []>} : vector<8x16xbf16>, vector<16x128xbf16>, vector<8x128xf32> -> vector<8x128xf32>
    %236 = arith.truncf %222 : vector<8x16xf32> to vector<8x16xbf16>
    %c144 = arith.constant 144 : index
    %c0_88 = arith.constant 0 : index
    %237 = vector.load %arg3[%c144, %c0_88] : memref<208x128xbf16, #tpu.memory_space<vmem>>, vector<16x128xbf16>
    %cst_89 = arith.constant dense<0.000000e+00> : vector<8x128xf32>
    %238 = tpu.matmul %236, %237, %cst_89 {dimension_numbers = #tpu.dot_dimension_numbers<[1], [0], [0], [1], [0, 0, 1, 1], [], []>} : vector<8x16xbf16>, vector<16x128xbf16>, vector<8x128xf32> -> vector<8x128xf32>
    %239 = arith.addf %235, %238 : vector<8x128xf32>
    %240 = arith.truncf %232 : vector<8x16xf32> to vector<8x16xbf16>
    %c160 = arith.constant 160 : index
    %c0_90 = arith.constant 0 : index
    %241 = vector.load %arg3[%c160, %c0_90] : memref<208x128xbf16, #tpu.memory_space<vmem>>, vector<16x128xbf16>
    %cst_91 = arith.constant dense<0.000000e+00> : vector<8x128xf32>
    %242 = tpu.matmul %240, %241, %cst_91 {dimension_numbers = #tpu.dot_dimension_numbers<[1], [0], [0], [1], [0, 0, 1, 1], [], []>} : vector<8x16xbf16>, vector<16x128xbf16>, vector<8x128xf32> -> vector<8x128xf32>
    %243 = arith.addf %239, %242 : vector<8x128xf32>
    %c7 = arith.constant 7 : index
    %c0_92 = arith.constant 0 : index
    %244 = vector.load %arg2[%c7, %c0_92] : memref<16x128xf32, #tpu.memory_space<vmem>>, vector<1x128xf32>
    %245 = vector.broadcast %244 : vector<1x128xf32> to vector<8x128xf32>
    %246 = arith.addf %243, %245 : vector<8x128xf32>
    %247 = arith.truncf %130 : vector<8x32xf32> to vector<8x32xbf16>
    %c176 = arith.constant 176 : index
    %c0_93 = arith.constant 0 : index
    %248 = vector.load %arg3[%c176, %c0_93] : memref<208x128xbf16, #tpu.memory_space<vmem>>, vector<32x128xbf16>
    %cst_94 = arith.constant dense<0.000000e+00> : vector<8x128xf32>
    %249 = tpu.matmul %247, %248, %cst_94 {dimension_numbers = #tpu.dot_dimension_numbers<[1], [0], [0], [1], [0, 0, 1, 1], [], []>} : vector<8x32xbf16>, vector<32x128xbf16>, vector<8x128xf32> -> vector<8x128xf32>
    %c8 = arith.constant 8 : index
    %c0_95 = arith.constant 0 : index
    %250 = vector.load %arg2[%c8, %c0_95] : memref<16x128xf32, #tpu.memory_space<vmem>>, vector<1x128xf32>
    %251 = vector.broadcast %250 : vector<1x128xf32> to vector<8x128xf32>
    %252 = arith.addf %249, %251 : vector<8x128xf32>
    %253 = arith.addf %252, %246 : vector<8x128xf32>
    %254 = vector.extract_strided_slice %253 {offsets = [0, 0], sizes = [8, 16], strides = [1, 1]} : vector<8x128xf32> to vector<8x16xf32>
    %c9 = arith.constant 9 : index
    %c0_96 = arith.constant 0 : index
    %255 = vector.load %arg2[%c9, %c0_96] : memref<16x128xf32, #tpu.memory_space<vmem>>, vector<1x16xf32>
    %c10 = arith.constant 10 : index
    %c0_97 = arith.constant 0 : index
    %256 = vector.load %arg2[%c10, %c0_97] : memref<16x128xf32, #tpu.memory_space<vmem>>, vector<1x16xf32>
    %cst_98 = arith.constant dense<0.000000e+00> : vector<8xf32>
    %257 = vector.multi_reduction <add>, %254, %cst_98 [1] : vector<8x16xf32> to vector<8xf32>
    %258 = vector.shape_cast %257 : vector<8xf32> to vector<8x1xf32>
    %cst_99 = arith.constant 1.600000e+01 : f32
    %259 = vector.broadcast %cst_99 : f32 to vector<8x1xf32>
    %260 = arith.divf %258, %259 : vector<8x1xf32>
    %261 = vector.broadcast %260 : vector<8x1xf32> to vector<8x16xf32>
    %262 = arith.subf %254, %261 : vector<8x16xf32>
    %263 = arith.mulf %262, %262 : vector<8x16xf32>
    %cst_100 = arith.constant dense<0.000000e+00> : vector<8xf32>
    %264 = vector.multi_reduction <add>, %263, %cst_100 [1] : vector<8x16xf32> to vector<8xf32>
    %265 = vector.shape_cast %264 : vector<8xf32> to vector<8x1xf32>
    %cst_101 = arith.constant 1.600000e+01 : f32
    %266 = vector.broadcast %cst_101 : f32 to vector<8x1xf32>
    %267 = arith.divf %265, %266 : vector<8x1xf32>
    %cst_102 = arith.constant 9.99999974E-6 : f32
    %268 = vector.broadcast %cst_102 : f32 to vector<8x1xf32>
    %269 = arith.addf %267, %268 : vector<8x1xf32>
    %270 = math.rsqrt %269 : vector<8x1xf32>
    %271 = vector.broadcast %270 : vector<8x1xf32> to vector<8x16xf32>
    %272 = arith.mulf %262, %271 : vector<8x16xf32>
    %273 = vector.broadcast %255 : vector<1x16xf32> to vector<8x16xf32>
    %274 = arith.mulf %272, %273 : vector<8x16xf32>
    %275 = vector.broadcast %256 : vector<1x16xf32> to vector<8x16xf32>
    %276 = arith.addf %274, %275 : vector<8x16xf32>
    %277 = vector.shape_cast %276 : vector<8x16xf32> to vector<1x8x16xf32>
    %c0_103 = arith.constant 0 : index
    %c0_104 = arith.constant 0 : index
    %c0_105 = arith.constant 0 : index
    %278 = vector.load %arg5[%c0_103, %c0_104, %c0_105] : memref<1x8x16xf32, #tpu.memory_space<vmem>>, vector<1x8x16xf32>
    tpu.vector_store %arg5[%c0_103, %c0_104, %c0_105], %277 {strides = array<i32>} : memref<1x8x16xf32, #tpu.memory_space<vmem>>, vector<1x8x16xf32>,
    return
  }
  func.func @transform_0(%arg0: i32) -> (i32, i32, i32) {
    %c0_i32 = arith.constant 0 : i32
    %c0_i32_0 = arith.constant 0 : i32
    %c0_i32_1 = arith.constant 0 : i32
    return %arg0, %c0_i32, %c0_i32_0 : i32, i32, i32
  }
  func.func @transform_1(%arg0: i32) -> (i32, i32) {
    %c0_i32 = arith.constant 0 : i32
    %c0_i32_0 = arith.constant 0 : i32
    %c0_i32_1 = arith.constant 0 : i32
    return %c0_i32, %c0_i32_0 : i32, i32
  }
  func.func @transform_2(%arg0: i32) -> (i32, i32) {
    %c0_i32 = arith.constant 0 : i32
    %c0_i32_0 = arith.constant 0 : i32
    %c0_i32_1 = arith.constant 0 : i32
    return %c0_i32, %c0_i32_0 : i32, i32
  }
  func.func @transform_3(%arg0: i32) -> (i32, i32, i32) {
    %c0_i32 = arith.constant 0 : i32
    %c0_i32_0 = arith.constant 0 : i32
    %c0_i32_1 = arith.constant 0 : i32
    %c0_i32_2 = arith.constant 0 : i32
    return %c0_i32, %c0_i32_0, %c0_i32_1 : i32, i32, i32
  }
  func.func @transform_4(%arg0: i32) -> (i32, i32, i32) {
    %c0_i32 = arith.constant 0 : i32
    %c0_i32_0 = arith.constant 0 : i32
    %c0_i32_1 = arith.constant 0 : i32
    return %arg0, %c0_i32, %c0_i32_0 : i32, i32, i32
  }
}

</mosaic_0001>

<llo_original>
// kernel: tpu_custom_call.1
$region0: #{tpu_custom_call.1}
  #allocation0 [shape = 'u32[]', space=smem, size = 0x4, offset = 0x4, fixed_abs, tag = 'smem constant byte address 0x4 - core index']
  #allocation1 [shape = 'u32[144,128]{1,0:T(1,128)}', space=vmem, size = 0x12000, scoped, tag = 'internal scratch']
  %s0 = inlined_call_operand.hbm [shape: f32[2,8,32], index: 0, kind: input, shape index: {}]
  %s1 = inlined_call_operand.hbm [shape: f32[16,128], index: 1, kind: input, shape index: {}]
  %s2 = inlined_call_operand.hbm [shape: bf16[208,128], index: 2, kind: input, shape index: {}]
  %s3 = inlined_call_operand.hbm [shape: bf16[4,8,32], index: 3, kind: input, shape index: {}]
  %s4 = inlined_call_operand.hbm [shape: f32[2,8,16], index: 4, kind: output, shape index: {}]
  %s5 = sld [smem:[#allocation0]]
  $region65: #{tpu_custom_call.1} parent=0
    _
  %s7 = ssub.s32 1, %s5
  %s8 = scalar_select 0, %s7, %s5
  $region1: #{tpu_custom_call.1} parent=0
    #allocation2 [shape = 'u8[8192]{0}', space=vmem, size = 0x2000, scoped, tag = 'input window, operand 0']
    #allocation3 [shape = 's32[2]{0}', space=sflag, size = 0x8, scoped, tag = 'scoped memory for tpu_custom_call.1']
    #allocation4 [shape = 's32[2]{0}', space=sflag, size = 0x8, scoped, tag = 'scoped memory for tpu_custom_call.1']
    #allocation5 [shape = 'u8[8192]{0}', space=vmem, size = 0x2000, scoped, tag = 'input window, operand 1, single buffered']
    #allocation6 [shape = 's32[1]{0}', space=sflag, size = 0x4, scoped, tag = 'scoped memory for tpu_custom_call.1']
    #allocation7 [shape = 'u8[53248]{0}', space=vmem, size = 0xd000, scoped, tag = 'input window, operand 2, single buffered']
    #allocation8 [shape = 'u8[8192]{0}', space=vmem, size = 0x2000, scoped, tag = 'input window, operand 3, single buffered']
    #allocation9 [shape = 's32[1]{0}', space=sflag, size = 0x4, scoped, tag = 'scoped memory for tpu_custom_call.1']
    #allocation10 [shape = 'u8[8192]{0}', space=vmem, size = 0x2000, scoped, tag = 'output window, operand 0']
    %9 = vsyncpa [#allocation3], 0
    %s10 = scalar_lea.sflag [#allocation3], 1
    %11 = vsyncpa %s10, 0
    %12 = vsyncpa [#allocation6], 0
    %13 = vsyncpa [#allocation9], 0
    %14 = vsyncpa [#allocation4], 0
    %s15 = scalar_lea.sflag [#allocation4], 1
    %16 = vsyncpa %s15, 0
    loop: start=0, step=1, limit=4
    $region2: #{tpu_custom_call.1} parent=1 // loop_pre_header
      _
    $region3: #{tpu_custom_call.1} parent=1 // loop_header
      %s18 = sphi 0, %s22
      %p19 = scmp.ge.s32.totalorder %s18, 4
      %s28 = sphi 0, %s30
      %s31 = sphi 0, %s28
      %s32 = sphi 0, %s31
      %s48 = sphi 0, %s32
      %s52 = sphi 0, %s52
      %s54 = sphi 0, %s52
      %s55 = sphi 0, %s54
      %s69 = sphi 0, %s55
      %s73 = sphi 0, %s73
      %s75 = sphi 0, %s73
      %s76 = sphi 0, %s75
      %s90 = sphi 0, %s76
      %s94 = sphi 0, %s94
      %s96 = sphi 0, %s94
      %s97 = sphi 0, %s96
      %s111 = sphi 0, %s97
      %s117 = sphi 0, %s119
      %s120 = sphi 0, %s117
      %s121 = sphi 0, %s120
      %s137 = sphi 0, %s121
    $region4: #{tpu_custom_call.1} parent=1 // loop_header_branch
      %21 = sbr.rel (%p19) target = $region8
    $region5: #{tpu_custom_call.1} parent=1 // loop_body
      %s23 = ssub.s32 %s18, 1
      %s24 = ssub.s32 %s18, 2
      %s25 = sadd.s32 %s18, 1
      %s26 = ssub.s32 %s18, %s25
      %p27 = scmp.eq.s32.totalorder %s26, 0
      %s29 = sadd.s32 %s28, 1
      %s30 = scalar_select %p27, %s28, %s29
      %p33 = pneg %p27
      %p34 = scmp.eq.s32.totalorder %s18, 1
      %p35 = por %p33, %p34
      %p36 = scmp.ne.s32.totalorder %s28, %s31
      %p37 = scmp.eq.s32.totalorder %s18, 0
      %p38 = por %p36, %p37
      %p39 = scmp.ne.s32.totalorder %s28, %s31
      %p40 = scmp.eq.s32.totalorder %s23, 1
      %p41 = por %p39, %p40
      %p42 = scmp.ne.s32.totalorder %s31, %s32
      %p43 = scmp.eq.s32.totalorder %s23, 0
      %p44 = por %p42, %p43
      %p45 = scmp.ne.s32.totalorder %s31, %s32
      %p46 = scmp.eq.s32.totalorder %s24, 1
      %p47 = por %p45, %p46
      %p49 = scmp.ne.s32.totalorder %s32, %s48
      %p50 = scmp.eq.s32.totalorder %s24, 0
      %p51 = por %p49, %p50
      %s53 = sadd.s32 %s52, 1
      %p56 = scmp.eq.s32.totalorder %s18, 1
      %p57 = scmp.ne.s32.totalorder %s52, %s54
      %p58 = scmp.eq.s32.totalorder %s18, 0
      %p59 = por %p57, %p58
      %p60 = scmp.ne.s32.totalorder %s52, %s54
      %p61 = scmp.eq.s32.totalorder %s23, 1
      %p62 = por %p60, %p61
      %p63 = scmp.ne.s32.totalorder %s54, %s55
      %p64 = scmp.eq.s32.totalorder %s23, 0
      %p65 = por %p63, %p64
      %p66 = scmp.ne.s32.totalorder %s54, %s55
      %p67 = scmp.eq.s32.totalorder %s24, 1
      %p68 = por %p66, %p67
      %p70 = scmp.ne.s32.totalorder %s55, %s69
      %p71 = scmp.eq.s32.totalorder %s24, 0
      %p72 = por %p70, %p71
      %s74 = sadd.s32 %s73, 1
      %p77 = scmp.eq.s32.totalorder %s18, 1
      %p78 = scmp.ne.s32.totalorder %s73, %s75
      %p79 = scmp.eq.s32.totalorder %s18, 0
      %p80 = por %p78, %p79
      %p81 = scmp.ne.s32.totalorder %s73, %s75
      %p82 = scmp.eq.s32.totalorder %s23, 1
      %p83 = por %p81, %p82
      %p84 = scmp.ne.s32.totalorder %s75, %s76
      %p85 = scmp.eq.s32.totalorder %s23, 0
      %p86 = por %p84, %p85
      %p87 = scmp.ne.s32.totalorder %s75, %s76
      %p88 = scmp.eq.s32.totalorder %s24, 1
      %p89 = por %p87, %p88
      %p91 = scmp.ne.s32.totalorder %s76, %s90
      %p92 = scmp.eq.s32.totalorder %s24, 0
      %p93 = por %p91, %p92
      %s95 = sadd.s32 %s94, 1
      %p98 = scmp.eq.s32.totalorder %s18, 1
      %p99 = scmp.ne.s32.totalorder %s94, %s96
      %p100 = scmp.eq.s32.totalorder %s18, 0
      %p101 = por %p99, %p100
      %p102 = scmp.ne.s32.totalorder %s94, %s96
      %p103 = scmp.eq.s32.totalorder %s23, 1
      %p104 = por %p102, %p103
      %p105 = scmp.ne.s32.totalorder %s96, %s97
      %p106 = scmp.eq.s32.totalorder %s23, 0
      %p107 = por %p105, %p106
      %p108 = scmp.ne.s32.totalorder %s96, %s97
      %p109 = scmp.eq.s32.totalorder %s24, 1
      %p110 = por %p108, %p109
      %p112 = scmp.ne.s32.totalorder %s97, %s111
      %p113 = scmp.eq.s32.totalorder %s24, 0
      %p114 = por %p112, %p113
      %s115 = ssub.s32 %s18, %s25
      %p116 = scmp.eq.s32.totalorder %s115, 0
      %s118 = sadd.s32 %s117, 1
      %s119 = scalar_select %p116, %s117, %s118
      %p122 = pneg %p116
      %p123 = scmp.eq.s32.totalorder %s18, 1
      %p124 = por %p122, %p123
      %p125 = scmp.ne.s32.totalorder %s117, %s120
      %p126 = scmp.eq.s32.totalorder %s18, 0
      %p127 = por %p125, %p126
      %p128 = scmp.ne.s32.totalorder %s117, %s120
      %p129 = scmp.eq.s32.totalorder %s23, 1
      %p130 = por %p128, %p129
      %p131 = scmp.ne.s32.totalorder %s120, %s121
      %p132 = scmp.eq.s32.totalorder %s23, 0
      %p133 = por %p131, %p132
      %p134 = scmp.ne.s32.totalorder %s120, %s121
      %p135 = scmp.eq.s32.totalorder %s24, 1
      %p136 = por %p134, %p135
      %p138 = scmp.ne.s32.totalorder %s121, %s137
      %p139 = scmp.eq.s32.totalorder %s24, 0
      %p140 = por %p138, %p139
      %p141 = scmp.le.s32.totalorder 1, %s18
      %p142 = scmp.lt.s32.totalorder %s18, 3
      %p143 = pnand %p141, %p142
      %p144 = pneg %p143
      // Predicated region
      $region9: #{tpu_custom_call.1} parent=5 // pred_check
        _
      $region10: #{tpu_custom_call.1} parent=5 // pred_check_branch
        %146 = sbr.rel (%p143) target = $region12
      $region11: #{tpu_custom_call.1} parent=5 // pred_region
        %s147 = ssub.s32 %s18, 1
        // Predicated region
        $region13: #{tpu_custom_call.1} parent=11 // pred_check
          %p148 = pneg %p65
        $region14: #{tpu_custom_call.1} parent=11 // pred_check_branch
          %150 = sbr.rel (%p148) target = $region16
        $region15: #{tpu_custom_call.1} parent=11 // pred_region
          %s152 = ssub.s32 256, 256
          %153 = vsyncadd [#allocation6], %s152
          %s154 = sshll.u32 [#allocation5], 4
          %s155 = int_to_ptr.vmem [resolvable:$true] %s154
          %160 = dma.hbm_to_vmem [thread:$0]  %s1, 256, %s155, [#allocation6], 128, 128, 8
        $region16: #{tpu_custom_call.1} parent=11 // pred_fallthru
          _
        // Predicated region
        $region17: #{tpu_custom_call.1} parent=11 // pred_check
          %p161 = pneg %p86
        $region18: #{tpu_custom_call.1} parent=11 // pred_check_branch
          %163 = sbr.rel (%p161) target = $region20
        $region19: #{tpu_custom_call.1} parent=11 // pred_region
          %s165 = ssub.s32 1664, 1664
          %166 = vsyncadd [#allocation6], %s165
          %s167 = sshll.u32 [#allocation7], 4
          %s168 = int_to_ptr.vmem [resolvable:$true] %s167
          %173 = dma.hbm_to_vmem [thread:$0]  %s2, 1664, %s168, [#allocation6], 64, 64, 4
        $region20: #{tpu_custom_call.1} parent=11 // pred_fallthru
          _
        // Predicated region
        $region21: #{tpu_custom_call.1} parent=11 // pred_check
          %p174 = pneg %p107
        $region22: #{tpu_custom_call.1} parent=11 // pred_check_branch
          %176 = sbr.rel (%p174) target = $region24
        $region23: #{tpu_custom_call.1} parent=11 // pred_region
          %s178 = ssub.s32 256, 256
          %179 = vsyncadd [#allocation9], %s178
          %s180 = sshll.u32 [#allocation8], 4
          %s181 = int_to_ptr.vmem [resolvable:$true] %s180
          %186 = dma.hbm_to_vmem [thread:$0]  %s3, 256, %s181, [#allocation9], 64, 64, 4
        $region24: #{tpu_custom_call.1} parent=11 // pred_fallthru
          _
      $region12: #{tpu_custom_call.1} parent=5 // pred_fallthru
        _
      %p187 = scmp.lt.s32.totalorder %s18, 2
      // Predicated region
      $region25: #{tpu_custom_call.1} parent=5 // pred_check
        %p188 = pneg %p187
      $region26: #{tpu_custom_call.1} parent=5 // pred_check_branch
        %190 = sbr.rel (%p188) target = $region28
      $region27: #{tpu_custom_call.1} parent=5 // pred_region
        // Predicated region
        $region29: #{tpu_custom_call.1} parent=27 // pred_check
          %p191 = pneg %p38
        $region30: #{tpu_custom_call.1} parent=27 // pred_check_branch
          %193 = sbr.rel (%p191) target = $region32
        $region31: #{tpu_custom_call.1} parent=27 // pred_region
          %s194 = sand.u32 %s28, 1
          %s195 = scalar_lea.sflag [#allocation3], %s194
          %s196 = sand.u32 %s28, 1
          %s197 = smul.addr %s196, 8
          %s198 = scalar_lea.vmem [#allocation2], %s197
          %s200 = ssub.s32 128, 128
          %201 = vsyncadd %s195, %s200
          %s202 = smul.addr %s18, 128
          %s203 = scalar_lea.hbm %s0, %s202
          %s205 = sshll.u32 %s198, 4
          %s206 = int_to_ptr.vmem [resolvable:$true] %s205
          %208 = dma.hbm_to_vmem [thread:$0]  %s203, 128, %s206, %s195
        $region32: #{tpu_custom_call.1} parent=27 // pred_fallthru
          _
      $region28: #{tpu_custom_call.1} parent=5 // pred_fallthru
        _
      %p209 = scmp.le.s32.totalorder 1, %s18
      %p210 = scmp.lt.s32.totalorder %s18, 3
      %p211 = pnand %p209, %p210
      %p212 = pneg %p211
      // Predicated region
      $region33: #{tpu_custom_call.1} parent=5 // pred_check
        _
      $region34: #{tpu_custom_call.1} parent=5 // pred_check_branch
        %214 = sbr.rel (%p211) target = $region36
      $region35: #{tpu_custom_call.1} parent=5 // pred_region
        %s215 = ssub.s32 %s18, 1
        %s216 = sand.u32 %s31, 1
        %s217 = scalar_lea.sflag [#allocation3], %s216
        %s218 = sand.u32 %s31, 1
        %s219 = smul.addr %s218, 8
        %s220 = scalar_lea.vmem [#allocation2], %s219
        // Predicated region
        $region37: #{tpu_custom_call.1} parent=35 // pred_check
          %p221 = pneg %p44
        $region38: #{tpu_custom_call.1} parent=35 // pred_check_branch
          %223 = sbr.rel (%p221) target = $region40
        $region39: #{tpu_custom_call.1} parent=35 // pred_region
          %224 = dma.done %s217, 128
        $region40: #{tpu_custom_call.1} parent=35 // pred_fallthru
          _
        // Predicated region
        $region41: #{tpu_custom_call.1} parent=35 // pred_check
          %p225 = pneg %p65
        $region42: #{tpu_custom_call.1} parent=35 // pred_check_branch
          %227 = sbr.rel (%p225) target = $region44
        $region43: #{tpu_custom_call.1} parent=35 // pred_region
          %228 = dma.done [#allocation6], 256
        $region44: #{tpu_custom_call.1} parent=35 // pred_fallthru
          _
        // Predicated region
        $region45: #{tpu_custom_call.1} parent=35 // pred_check
          %p229 = pneg %p86
        $region46: #{tpu_custom_call.1} parent=35 // pred_check_branch
          %231 = sbr.rel (%p229) target = $region48
        $region47: #{tpu_custom_call.1} parent=35 // pred_region
          %232 = dma.done [#allocation6], 1664
        $region48: #{tpu_custom_call.1} parent=35 // pred_fallthru
          _
        // Predicated region
        $region49: #{tpu_custom_call.1} parent=35 // pred_check
          %p233 = pneg %p107
        $region50: #{tpu_custom_call.1} parent=35 // pred_check_branch
          %235 = sbr.rel (%p233) target = $region52
        $region51: #{tpu_custom_call.1} parent=35 // pred_region
          %236 = dma.done [#allocation9], 256
        $region52: #{tpu_custom_call.1} parent=35 // pred_fallthru
          _
        %s237 = sand.u32 %s31, 1
        %s238 = scalar_lea.sflag [#allocation3], %s237
        %s239 = sand.u32 %s31, 1
        %s240 = smul.addr %s239, 8
        %s241 = scalar_lea.vmem [#allocation2], %s240
        %p242 = pneg %p44
        %p243 = pneg %p41
        %p244 = pneg %p65
        %p245 = pneg %p62
        %p246 = pneg %p86
        %p247 = pneg %p83
        %p248 = pneg %p107
        %p249 = pneg %p104
        %p250 = pneg %p133
        %p251 = pneg %p130
        %s252 = sand.u32 %s120, 1
        %s253 = scalar_lea.sflag [#allocation4], %s252
        %s254 = sand.u32 %s120, 1
        %s255 = smul.addr %s254, 8
        %s256 = scalar_lea.vmem [#allocation10], %s255
        %v258 = vld [vmem:[%s220] sm:$0xff]
        %v259 = vld [vmem:[#allocation5] sm:$0x1]
        %v260 = vld [vmem:[#allocation5 + $0x1] sm:$0x1]
        %vm261 = vcmask 261120
        %v262 = vsel %vm261, %v258, 0.0
        %263 = vadd.xlane.f32.xlu0 %v262
        %v264 = vpop.xlane.xlu0 %263
        %v265 = vrcp.pop 32.0
        %v266 = vmul.f32 %v264, %v265
        %v267 = vsub.f32 %v258, %v266
        %v268 = vmul.f32 %v267, %v267
        %v269 = vsel %vm261, %v268, 0.0
        %270 = vadd.xlane.f32.xlu0 %v269
        %v271 = vpop.xlane.xlu0 %270
        %v272 = vmul.f32 %v271, %v265
        %v273 = vadd.f32 %v272, 1e-05
        %v274 = vrsqrt.pop %v273
        %v275 = vmul.f32 %v267, %v274
        %v276 = vlaneseq
        %v277 = vshrl.u32 %v276, 7
        %v278 = vsub.s32 0, %v277
        %v279 = vrot.slane %v259, %v278
        %v280 = vmul.f32 %v275, %v279
        %v281 = vlaneseq
        %v282 = vshrl.u32 %v281, 7
        %v283 = vsub.s32 0, %v282
        %v284 = vrot.slane %v260, %v283
        %v285 = vadd.f32 %v280, %v284
        %v286 = vpack.c.bf16 %v285, %v285
        %v287 = vld [vmem:[#allocation7] sm:$0xf]
        %v288 = vld [vmem:[#allocation7 + $0x4] sm:$0xf]
        %v289 = vld [vmem:[#allocation7 + $0x8] sm:$0xf]
        %v290 = vld [vmem:[#allocation7 + $0xc] sm:$0xf]
        %v291 = vld [vmem:[#allocation5 + $0x2] sm:$0x1]
        %v292 = vlaneseq
        %v293 = vshrl.u32 %v292, 7
        %v294 = vsub.s32 0, %v293
        %v295 = vrot.slane %v291, %v294
        %v300 = vunpack.c.l.b16 %v287
        %v301 = vunpack.c.l.b16 %v288
        %v302 = vunpack.c.l.b16 %v289
        %v303 = vunpack.c.l.b16 %v290
        %v304 = vpack.c.b16 %v301, %v300
        %v305 = vpack.c.b16 %v303, %v302
        %v309 = vsel %vm261, %v286, 0
        %311 = vmatprep.subr.bf16.mxu0 0
        %312 = vmatpush1.bf16.msra.mxu0 %v304
        %313 = vmatprep.subr.bf16.mxu0 0
        %314 = vmatpush1.bf16.msra.mxu0 %v305
        %315 = vmatprep.subr.bf16.mxu0 0
        %316 = vmatpush1.bf16.msra.mxu0 0
        %317 = vmatprep.subr.bf16.mxu0 0
        %318 = vmatpush1.bf16.msra.mxu0 0
        %319 = vmatprep.subr.bf16.mxu0 0
        %320 = vmatpush1.bf16.msra.mxu0 0
        %321 = vmatprep.subr.bf16.mxu0 0
        %322 = vmatpush1.bf16.msra.mxu0 0
        %323 = vmatprep.subr.bf16.mxu0 0
        %324 = vmatpush1.bf16.msra.mxu0 0
        %325 = vmatprep.subr.bf16.mxu0 0
        %326 = vmatpush1.bf16.msra.mxu0 0
        %327 = vmatprep.subr.bf16.mxu0 0
        %328 = vmatpush1.bf16.msra.mxu0 0
        %329 = vmatprep.subr.bf16.mxu0 0
        %330 = vmatpush1.bf16.msra.mxu0 0
        %331 = vmatprep.subr.bf16.mxu0 0
        %332 = vmatpush1.bf16.msra.mxu0 0
        %333 = vmatprep.subr.bf16.mxu0 0
        %334 = vmatpush1.bf16.msra.mxu0 0
        %335 = vmatprep.subr.bf16.mxu0 0
        %336 = vmatpush1.bf16.msra.mxu0 0
        %337 = vmatprep.subr.bf16.mxu0 0
        %338 = vmatpush1.bf16.msra.mxu0 0
        %339 = vmatprep.subr.bf16.mxu0 0
        %340 = vmatpush1.bf16.msra.mxu0 0
        %341 = vmatprep.subr.bf16.mxu0 0
        %342 = vmatpush1.bf16.msra.mxu0 0
        %343 = vmatprep.mubr.bf16.mxu0 0
        %344 = vmatmul.mubr.bf16.gmra.mrb[0].mxu0 %v309
        %v345 = vpop.f32.mrb[0].mxu0
        %v346 = vadd.f32 %v295, %v345
        %v347 = vpop.f32.mrb[0].mxu0
        %v348 = vpop.f32.mrb[0].mxu0
        %v349 = vpop.f32.mrb[0].mxu0
        %350 = vdwg.mxu0
        %v351 = vpack.c.bf16 %v346, %v346
        %353 = vrot.lane.b32.xlu0 %v351, 96
        %v354 = vpop.permute.xlu0 %353
        %vm355 = vcmask 64512
        %v357 = vsel %vm355, %v351, 0
        %v360 = vsel %vm355, %v354, 0
        %362 = vmatprep.subr.bf16.mxu0 0
        %363 = vmatpush1.bf16.xpose.msra.mxu0 %v360
        %364 = vmatprep.subr.bf16.mxu0 0
        %365 = vmatpush1.bf16.xpose.msra.mxu0 0
        %366 = vmatprep.subr.bf16.mxu0 0
        %367 = vmatpush1.bf16.xpose.msra.mxu0 0
        %368 = vmatprep.subr.bf16.mxu0 0
        %369 = vmatpush1.bf16.xpose.msra.mxu0 0
        %370 = vmatprep.subr.bf16.mxu0 0
        %371 = vmatpush1.bf16.xpose.msra.mxu0 0
        %372 = vmatprep.subr.bf16.mxu0 0
        %373 = vmatpush1.bf16.xpose.msra.mxu0 0
        %374 = vmatprep.subr.bf16.mxu0 0
        %375 = vmatpush1.bf16.xpose.msra.mxu0 0
        %376 = vmatprep.subr.bf16.mxu0 0
        %377 = vmatpush1.bf16.xpose.msra.mxu0 0
        %378 = vmatprep.subr.bf16.mxu0 0
        %379 = vmatpush1.bf16.xpose.msra.mxu0 0
        %380 = vmatprep.subr.bf16.mxu0 0
        %381 = vmatpush1.bf16.xpose.msra.mxu0 0
        %382 = vmatprep.subr.bf16.mxu0 0
        %383 = vmatpush1.bf16.xpose.msra.mxu0 0
        %384 = vmatprep.subr.bf16.mxu0 0
        %385 = vmatpush1.bf16.xpose.msra.mxu0 0
        %386 = vmatprep.subr.bf16.mxu0 0
        %387 = vmatpush1.bf16.xpose.msra.mxu0 0
        %388 = vmatprep.subr.bf16.mxu0 0
        %389 = vmatpush1.bf16.xpose.msra.mxu0 0
        %390 = vmatprep.subr.bf16.mxu0 0
        %391 = vmatpush1.bf16.xpose.msra.mxu0 0
        %392 = vmatprep.subr.bf16.mxu0 0
        %393 = vmatpush1.bf16.xpose.msra.mxu0 0
        %394 = vmatprep.mubr.bf16.mxu0 0
        %395 = vmatmul.mubr.bf16.gmra.mrb[0].mxu0 %v357
        %v396 = vpop.f32.mrb[0].mxu0
        %v397 = vadd.f32 0.0, %v396
        %v398 = vpop.f32.mrb[0].mxu0
        %v399 = vpop.f32.mrb[0].mxu0
        %v400 = vpop.f32.mrb[0].mxu0
        %401 = vdwg.mxu0
        %v402 = vmul.f32 %v397, 0.35355338
        %v403 = vsel %vm355, %v402, -inf
        %404 = vmax.xlane.f32.xlu0 %v403
        %v405 = vpop.xlane.xlu0 %404
        %v406 = vsub.f32 %v402, %v405
        %v407 = vmul.f32 %v406, 1.442695
        %v408 = vpow.pop %v407
        %v409 = vsel %vm355, %v408, 0.0
        %410 = vadd.xlane.f32.xlu0 %v409
        %v411 = vpop.xlane.xlu0 %410
        %v412 = vrcp.pop %v411
        %v413 = vmul.f32 %v408, %v412
        %v414 = vpack.c.bf16 %v413, %v413
        %415 = vrot.lane.b32.xlu0 %v351, 64
        %v416 = vpop.permute.xlu0 %415
        %v418 = vsel %vm355, %v414, 0
        %vm420 = vcmask 1043456
        %v422 = vsel %vm420, %v416, 0
        %424 = vmatprep.subr.bf16.mxu0 0
        %425 = vmatpush1.bf16.msra.mxu0 %v422
        %426 = vmatprep.subr.bf16.mxu0 0
        %427 = vmatpush1.bf16.msra.mxu0 0
        %428 = vmatprep.subr.bf16.mxu0 0
        %429 = vmatpush1.bf16.msra.mxu0 0
        %430 = vmatprep.subr.bf16.mxu0 0
        %431 = vmatpush1.bf16.msra.mxu0 0
        %432 = vmatprep.subr.bf16.mxu0 0
        %433 = vmatpush1.bf16.msra.mxu0 0
        %434 = vmatprep.subr.bf16.mxu0 0
        %435 = vmatpush1.bf16.msra.mxu0 0
        %436 = vmatprep.subr.bf16.mxu0 0
        %437 = vmatpush1.bf16.msra.mxu0 0
        %438 = vmatprep.subr.bf16.mxu0 0
        %439 = vmatpush1.bf16.msra.mxu0 0
        %440 = vmatprep.subr.bf16.mxu0 0
        %441 = vmatpush1.bf16.msra.mxu0 0
        %442 = vmatprep.subr.bf16.mxu0 0
        %443 = vmatpush1.bf16.msra.mxu0 0
        %444 = vmatprep.subr.bf16.mxu0 0
        %445 = vmatpush1.bf16.msra.mxu0 0
        %446 = vmatprep.subr.bf16.mxu0 0
        %447 = vmatpush1.bf16.msra.mxu0 0
        %448 = vmatprep.subr.bf16.mxu0 0
        %449 = vmatpush1.bf16.msra.mxu0 0
        %450 = vmatprep.subr.bf16.mxu0 0
        %451 = vmatpush1.bf16.msra.mxu0 0
        %452 = vmatprep.subr.bf16.mxu0 0
        %453 = vmatpush1.bf16.msra.mxu0 0
        %454 = vmatprep.subr.bf16.mxu0 0
        %455 = vmatpush1.bf16.msra.mxu0 0
        %456 = vmatprep.mubr.bf16.mxu0 0
        %457 = vmatmul.mubr.bf16.gmra.mrb[0].mxu0 %v418
        %v458 = vpop.f32.mrb[0].mxu0
        %v459 = vadd.f32 0.0, %v458
        %v460 = vpop.f32.mrb[0].mxu0
        %v461 = vpop.f32.mrb[0].mxu0
        %v462 = vpop.f32.mrb[0].mxu0
        %463 = vdwg.mxu0
        %v464 = vpack.c.bf16 %v459, %v459
        %v465 = vld [vmem:[#allocation8] sm:$0xf]
        %466 = vrot.lane.b32.xlu0 %v351, 120
        %v467 = vpop.permute.xlu0 %466
        %468 = vrot.lane.b32.xlu0 %v351, 88
        %v469 = vpop.permute.xlu0 %468
        %v471 = vsel %vm355, %v467, 0
        %v474 = vsel %vm355, %v469, 0
        %476 = vmatprep.subr.bf16.mxu0 0
        %477 = vmatpush1.bf16.xpose.msra.mxu0 %v474
        %478 = vmatprep.subr.bf16.mxu0 0
        %479 = vmatpush1.bf16.xpose.msra.mxu0 0
        %480 = vmatprep.subr.bf16.mxu0 0
        %481 = vmatpush1.bf16.xpose.msra.mxu0 0
        %482 = vmatprep.subr.bf16.mxu0 0
        %483 = vmatpush1.bf16.xpose.msra.mxu0 0
        %484 = vmatprep.subr.bf16.mxu0 0
        %485 = vmatpush1.bf16.xpose.msra.mxu0 0
        %486 = vmatprep.subr.bf16.mxu0 0
        %487 = vmatpush1.bf16.xpose.msra.mxu0 0
        %488 = vmatprep.subr.bf16.mxu0 0
        %489 = vmatpush1.bf16.xpose.msra.mxu0 0
        %490 = vmatprep.subr.bf16.mxu0 0
        %491 = vmatpush1.bf16.xpose.msra.mxu0 0
        %492 = vmatprep.subr.bf16.mxu0 0
        %493 = vmatpush1.bf16.xpose.msra.mxu0 0
        %494 = vmatprep.subr.bf16.mxu0 0
        %495 = vmatpush1.bf16.xpose.msra.mxu0 0
        %496 = vmatprep.subr.bf16.mxu0 0
        %497 = vmatpush1.bf16.xpose.msra.mxu0 0
        %498 = vmatprep.subr.bf16.mxu0 0
        %499 = vmatpush1.bf16.xpose.msra.mxu0 0
        %500 = vmatprep.subr.bf16.mxu0 0
        %501 = vmatpush1.bf16.xpose.msra.mxu0 0
        %502 = vmatprep.subr.bf16.mxu0 0
        %503 = vmatpush1.bf16.xpose.msra.mxu0 0
        %504 = vmatprep.subr.bf16.mxu0 0
        %505 = vmatpush1.bf16.xpose.msra.mxu0 0
        %506 = vmatprep.subr.bf16.mxu0 0
        %507 = vmatpush1.bf16.xpose.msra.mxu0 0
        %508 = vmatprep.mubr.bf16.mxu0 0
        %509 = vmatmul.mubr.bf16.gmra.mrb[0].mxu0 %v471
        %v510 = vpop.f32.mrb[0].mxu0
        %v511 = vadd.f32 0.0, %v510
        %v512 = vpop.f32.mrb[0].mxu0
        %v513 = vpop.f32.mrb[0].mxu0
        %v514 = vpop.f32.mrb[0].mxu0
        %515 = vdwg.mxu0
        %v516 = vmul.f32 %v511, 0.35355338
        %v517 = vsel %vm355, %v516, -inf
        %518 = vmax.xlane.f32.xlu0 %v517
        %v519 = vpop.xlane.xlu0 %518
        %v520 = vsub.f32 %v516, %v519
        %v521 = vmul.f32 %v520, 1.442695
        %v522 = vpow.pop %v521
        %v523 = vsel %vm355, %v522, 0.0
        %524 = vadd.xlane.f32.xlu0 %v523
        %v525 = vpop.xlane.xlu0 %524
        %v526 = vrcp.pop %v525
        %v527 = vmul.f32 %v522, %v526
        %v528 = vpack.c.bf16 %v527, %v527
        %529 = vrot.lane.b32.xlu0 %v351, 56
        %v530 = vpop.permute.xlu0 %529
        %v532 = vsel %vm355, %v528, 0
        %v535 = vsel %vm420, %v530, 0
        %537 = vmatprep.subr.bf16.mxu0 0
        %538 = vmatpush1.bf16.msra.mxu0 %v535
        %539 = vmatprep.subr.bf16.mxu0 0
        %540 = vmatpush1.bf16.msra.mxu0 0
        %541 = vmatprep.subr.bf16.mxu0 0
        %542 = vmatpush1.bf16.msra.mxu0 0
        %543 = vmatprep.subr.bf16.mxu0 0
        %544 = vmatpush1.bf16.msra.mxu0 0
        %545 = vmatprep.subr.bf16.mxu0 0
        %546 = vmatpush1.bf16.msra.mxu0 0
        %547 = vmatprep.subr.bf16.mxu0 0
        %548 = vmatpush1.bf16.msra.mxu0 0
        %549 = vmatprep.subr.bf16.mxu0 0
        %550 = vmatpush1.bf16.msra.mxu0 0
        %551 = vmatprep.subr.bf16.mxu0 0
        %552 = vmatpush1.bf16.msra.mxu0 0
        %553 = vmatprep.subr.bf16.mxu0 0
        %554 = vmatpush1.bf16.msra.mxu0 0
        %555 = vmatprep.subr.bf16.mxu0 0
        %556 = vmatpush1.bf16.msra.mxu0 0
        %557 = vmatprep.subr.bf16.mxu0 0
        %558 = vmatpush1.bf16.msra.mxu0 0
        %559 = vmatprep.subr.bf16.mxu0 0
        %560 = vmatpush1.bf16.msra.mxu0 0
        %561 = vmatprep.subr.bf16.mxu0 0
        %562 = vmatpush1.bf16.msra.mxu0 0
        %563 = vmatprep.subr.bf16.mxu0 0
        %564 = vmatpush1.bf16.msra.mxu0 0
        %565 = vmatprep.subr.bf16.mxu0 0
        %566 = vmatpush1.bf16.msra.mxu0 0
        %567 = vmatprep.subr.bf16.mxu0 0
        %568 = vmatpush1.bf16.msra.mxu0 0
        %569 = vmatprep.mubr.bf16.mxu0 0
        %570 = vmatmul.mubr.bf16.gmra.mrb[0].mxu0 %v532
        %v571 = vpop.f32.mrb[0].mxu0
        %v572 = vadd.f32 0.0, %v571
        %v573 = vpop.f32.mrb[0].mxu0
        %v574 = vpop.f32.mrb[0].mxu0
        %v575 = vpop.f32.mrb[0].mxu0
        %576 = vdwg.mxu0
        %v577 = vpack.c.bf16 %v572, %v572
        %s578 = scalar_lea.vmem [#allocation8], 4
        %v579 = vld [vmem:[%s578] sm:$0xf]
        %v581 = vsel %vm355, %v577, 0
        %v584 = vsel %vm420, %v579, 0
        %586 = vmatprep.subr.bf16.mxu0 0
        %587 = vmatpush1.bf16.msra.mxu0 %v584
        %588 = vmatprep.subr.bf16.mxu0 0
        %589 = vmatpush1.bf16.msra.mxu0 0
        %590 = vmatprep.subr.bf16.mxu0 0
        %591 = vmatpush1.bf16.msra.mxu0 0
        %592 = vmatprep.subr.bf16.mxu0 0
        %593 = vmatpush1.bf16.msra.mxu0 0
        %594 = vmatprep.subr.bf16.mxu0 0
        %595 = vmatpush1.bf16.msra.mxu0 0
        %596 = vmatprep.subr.bf16.mxu0 0
        %597 = vmatpush1.bf16.msra.mxu0 0
        %598 = vmatprep.subr.bf16.mxu0 0
        %599 = vmatpush1.bf16.msra.mxu0 0
        %600 = vmatprep.subr.bf16.mxu0 0
        %601 = vmatpush1.bf16.msra.mxu0 0
        %602 = vmatprep.subr.bf16.mxu0 0
        %603 = vmatpush1.bf16.msra.mxu0 0
        %604 = vmatprep.subr.bf16.mxu0 0
        %605 = vmatpush1.bf16.msra.mxu0 0
        %606 = vmatprep.subr.bf16.mxu0 0
        %607 = vmatpush1.bf16.msra.mxu0 0
        %608 = vmatprep.subr.bf16.mxu0 0
        %609 = vmatpush1.bf16.msra.mxu0 0
        %610 = vmatprep.subr.bf16.mxu0 0
        %611 = vmatpush1.bf16.msra.mxu0 0
        %612 = vmatprep.subr.bf16.mxu0 0
        %613 = vmatpush1.bf16.msra.mxu0 0
        %614 = vmatprep.subr.bf16.mxu0 0
        %615 = vmatpush1.bf16.msra.mxu0 0
        %616 = vmatprep.subr.bf16.mxu0 0
        %617 = vmatpush1.bf16.msra.mxu0 0
        %618 = vmatprep.mubr.bf16.mxu0 0
        %619 = vmatmul.mubr.bf16.gmra.mrb[0].mxu0 %v581
        %v620 = vpop.f32.mrb[0].mxu0
        %v621 = vadd.f32 0.0, %v620
        %v622 = vpop.f32.mrb[0].mxu0
        %v623 = vpop.f32.mrb[0].mxu0
        %v624 = vpop.f32.mrb[0].mxu0
        %625 = vdwg.mxu0
        %v627 = vsel %vm355, %v464, 0
        %v630 = vsel %vm420, %v465, 0
        %632 = vmatprep.subr.bf16.mxu0 0
        %633 = vmatpush1.bf16.msra.mxu0 %v630
        %634 = vmatprep.subr.bf16.mxu0 0
        %635 = vmatpush1.bf16.msra.mxu0 0
        %636 = vmatprep.subr.bf16.mxu0 0
        %637 = vmatpush1.bf16.msra.mxu0 0
        %638 = vmatprep.subr.bf16.mxu0 0
        %639 = vmatpush1.bf16.msra.mxu0 0
        %640 = vmatprep.subr.bf16.mxu0 0
        %641 = vmatpush1.bf16.msra.mxu0 0
        %642 = vmatprep.subr.bf16.mxu0 0
        %643 = vmatpush1.bf16.msra.mxu0 0
        %644 = vmatprep.subr.bf16.mxu0 0
        %645 = vmatpush1.bf16.msra.mxu0 0
        %646 = vmatprep.subr.bf16.mxu0 0
        %647 = vmatpush1.bf16.msra.mxu0 0
        %648 = vmatprep.subr.bf16.mxu0 0
        %649 = vmatpush1.bf16.msra.mxu0 0
        %650 = vmatprep.subr.bf16.mxu0 0
        %651 = vmatpush1.bf16.msra.mxu0 0
        %652 = vmatprep.subr.bf16.mxu0 0
        %653 = vmatpush1.bf16.msra.mxu0 0
        %654 = vmatprep.subr.bf16.mxu0 0
        %655 = vmatpush1.bf16.msra.mxu0 0
        %656 = vmatprep.subr.bf16.mxu0 0
        %657 = vmatpush1.bf16.msra.mxu0 0
        %658 = vmatprep.subr.bf16.mxu0 0
        %659 = vmatpush1.bf16.msra.mxu0 0
        %660 = vmatprep.subr.bf16.mxu0 0
        %661 = vmatpush1.bf16.msra.mxu0 0
        %662 = vmatprep.subr.bf16.mxu0 0
        %663 = vmatpush1.bf16.msra.mxu0 0
        %664 = vmatprep.mubr.bf16.mxu0 0
        %665 = vmatmul.mubr.bf16.gmra.mrb[0].mxu0 %v627
        %v666 = vpop.f32.mrb[0].mxu0
        %v667 = vadd.f32 %v621, %v666
        %v668 = vpop.f32.mrb[0].mxu0
        %v669 = vpop.f32.mrb[0].mxu0
        %v670 = vpop.f32.mrb[0].mxu0
        %671 = vdwg.mxu0
        %672 = vrot.lane.b32.xlu0 %v351, 112
        %v673 = vpop.permute.xlu0 %672
        %674 = vrot.lane.b32.xlu0 %v351, 80
        %v675 = vpop.permute.xlu0 %674
        %v677 = vsel %vm355, %v673, 0
        %v680 = vsel %vm355, %v675, 0
        %682 = vmatprep.subr.bf16.mxu0 0
        %683 = vmatpush1.bf16.xpose.msra.mxu0 %v680
        %684 = vmatprep.subr.bf16.mxu0 0
        %685 = vmatpush1.bf16.xpose.msra.mxu0 0
        %686 = vmatprep.subr.bf16.mxu0 0
        %687 = vmatpush1.bf16.xpose.msra.mxu0 0
        %688 = vmatprep.subr.bf16.mxu0 0
        %689 = vmatpush1.bf16.xpose.msra.mxu0 0
        %690 = vmatprep.subr.bf16.mxu0 0
        %691 = vmatpush1.bf16.xpose.msra.mxu0 0
        %692 = vmatprep.subr.bf16.mxu0 0
        %693 = vmatpush1.bf16.xpose.msra.mxu0 0
        %694 = vmatprep.subr.bf16.mxu0 0
        %695 = vmatpush1.bf16.xpose.msra.mxu0 0
        %696 = vmatprep.subr.bf16.mxu0 0
        %697 = vmatpush1.bf16.xpose.msra.mxu0 0
        %698 = vmatprep.subr.bf16.mxu0 0
        %699 = vmatpush1.bf16.xpose.msra.mxu0 0
        %700 = vmatprep.subr.bf16.mxu0 0
        %701 = vmatpush1.bf16.xpose.msra.mxu0 0
        %702 = vmatprep.subr.bf16.mxu0 0
        %703 = vmatpush1.bf16.xpose.msra.mxu0 0
        %704 = vmatprep.subr.bf16.mxu0 0
        %705 = vmatpush1.bf16.xpose.msra.mxu0 0
        %706 = vmatprep.subr.bf16.mxu0 0
        %707 = vmatpush1.bf16.xpose.msra.mxu0 0
        %708 = vmatprep.subr.bf16.mxu0 0
        %709 = vmatpush1.bf16.xpose.msra.mxu0 0
        %710 = vmatprep.subr.bf16.mxu0 0
        %711 = vmatpush1.bf16.xpose.msra.mxu0 0
        %712 = vmatprep.subr.bf16.mxu0 0
        %713 = vmatpush1.bf16.xpose.msra.mxu0 0
        %714 = vmatprep.mubr.bf16.mxu0 0
        %715 = vmatmul.mubr.bf16.gmra.mrb[0].mxu0 %v677
        %v716 = vpop.f32.mrb[0].mxu0
        %v717 = vadd.f32 0.0, %v716
        %v718 = vpop.f32.mrb[0].mxu0
        %v719 = vpop.f32.mrb[0].mxu0
        %v720 = vpop.f32.mrb[0].mxu0
        %721 = vdwg.mxu0
        %v722 = vmul.f32 %v717, 0.35355338
        %v723 = vsel %vm355, %v722, -inf
        %724 = vmax.xlane.f32.xlu0 %v723
        %v725 = vpop.xlane.xlu0 %724
        %v726 = vsub.f32 %v722, %v725
        %v727 = vmul.f32 %v726, 1.442695
        %v728 = vpow.pop %v727
        %v729 = vsel %vm355, %v728, 0.0
        %730 = vadd.xlane.f32.xlu0 %v729
        %v731 = vpop.xlane.xlu0 %730
        %v732 = vrcp.pop %v731
        %v733 = vmul.f32 %v728, %v732
        %v734 = vpack.c.bf16 %v733, %v733
        %735 = vrot.lane.b32.xlu0 %v351, 48
        %v736 = vpop.permute.xlu0 %735
        %v738 = vsel %vm355, %v734, 0
        %v741 = vsel %vm420, %v736, 0
        %743 = vmatprep.subr.bf16.mxu0 0
        %744 = vmatpush1.bf16.msra.mxu0 %v741
        %745 = vmatprep.subr.bf16.mxu0 0
        %746 = vmatpush1.bf16.msra.mxu0 0
        %747 = vmatprep.subr.bf16.mxu0 0
        %748 = vmatpush1.bf16.msra.mxu0 0
        %749 = vmatprep.subr.bf16.mxu0 0
        %750 = vmatpush1.bf16.msra.mxu0 0
        %751 = vmatprep.subr.bf16.mxu0 0
        %752 = vmatpush1.bf16.msra.mxu0 0
        %753 = vmatprep.subr.bf16.mxu0 0
        %754 = vmatpush1.bf16.msra.mxu0 0
        %755 = vmatprep.subr.bf16.mxu0 0
        %756 = vmatpush1.bf16.msra.mxu0 0
        %757 = vmatprep.subr.bf16.mxu0 0
        %758 = vmatpush1.bf16.msra.mxu0 0
        %759 = vmatprep.subr.bf16.mxu0 0
        %760 = vmatpush1.bf16.msra.mxu0 0
        %761 = vmatprep.subr.bf16.mxu0 0
        %762 = vmatpush1.bf16.msra.mxu0 0
        %763 = vmatprep.subr.bf16.mxu0 0
        %764 = vmatpush1.bf16.msra.mxu0 0
        %765 = vmatprep.subr.bf16.mxu0 0
        %766 = vmatpush1.bf16.msra.mxu0 0
        %767 = vmatprep.subr.bf16.mxu0 0
        %768 = vmatpush1.bf16.msra.mxu0 0
        %769 = vmatprep.subr.bf16.mxu0 0
        %770 = vmatpush1.bf16.msra.mxu0 0
        %771 = vmatprep.subr.bf16.mxu0 0
        %772 = vmatpush1.bf16.msra.mxu0 0
        %773 = vmatprep.subr.bf16.mxu0 0
        %774 = vmatpush1.bf16.msra.mxu0 0
        %775 = vmatprep.mubr.bf16.mxu0 0
        %776 = vmatmul.mubr.bf16.gmra.mrb[0].mxu0 %v738
        %v777 = vpop.f32.mrb[0].mxu0
        %v778 = vadd.f32 0.0, %v777
        %v779 = vpop.f32.mrb[0].mxu0
        %v780 = vpop.f32.mrb[0].mxu0
        %v781 = vpop.f32.mrb[0].mxu0
        %782 = vdwg.mxu0
        %v783 = vpack.c.bf16 %v778, %v778
        %s784 = scalar_lea.vmem [#allocation8], 8
        %v785 = vld [vmem:[%s784] sm:$0xf]
        %v787 = vsel %vm355, %v783, 0
        %v790 = vsel %vm420, %v785, 0
        %792 = vmatprep.subr.bf16.mxu0 0
        %793 = vmatpush1.bf16.msra.mxu0 %v790
        %794 = vmatprep.subr.bf16.mxu0 0
        %795 = vmatpush1.bf16.msra.mxu0 0
        %796 = vmatprep.subr.bf16.mxu0 0
        %797 = vmatpush1.bf16.msra.mxu0 0
        %798 = vmatprep.subr.bf16.mxu0 0
        %799 = vmatpush1.bf16.msra.mxu0 0
        %800 = vmatprep.subr.bf16.mxu0 0
        %801 = vmatpush1.bf16.msra.mxu0 0
        %802 = vmatprep.subr.bf16.mxu0 0
        %803 = vmatpush1.bf16.msra.mxu0 0
        %804 = vmatprep.subr.bf16.mxu0 0
        %805 = vmatpush1.bf16.msra.mxu0 0
        %806 = vmatprep.subr.bf16.mxu0 0
        %807 = vmatpush1.bf16.msra.mxu0 0
        %808 = vmatprep.subr.bf16.mxu0 0
        %809 = vmatpush1.bf16.msra.mxu0 0
        %810 = vmatprep.subr.bf16.mxu0 0
        %811 = vmatpush1.bf16.msra.mxu0 0
        %812 = vmatprep.subr.bf16.mxu0 0
        %813 = vmatpush1.bf16.msra.mxu0 0
        %814 = vmatprep.subr.bf16.mxu0 0
        %815 = vmatpush1.bf16.msra.mxu0 0
        %816 = vmatprep.subr.bf16.mxu0 0
        %817 = vmatpush1.bf16.msra.mxu0 0
        %818 = vmatprep.subr.bf16.mxu0 0
        %819 = vmatpush1.bf16.msra.mxu0 0
        %820 = vmatprep.subr.bf16.mxu0 0
        %821 = vmatpush1.bf16.msra.mxu0 0
        %822 = vmatprep.subr.bf16.mxu0 0
        %823 = vmatpush1.bf16.msra.mxu0 0
        %824 = vmatprep.mubr.bf16.mxu0 0
        %825 = vmatmul.mubr.bf16.gmra.mrb[0].mxu0 %v787
        %v826 = vpop.f32.mrb[0].mxu0
        %v827 = vadd.f32 0.0, %v826
        %v828 = vpop.f32.mrb[0].mxu0
        %v829 = vpop.f32.mrb[0].mxu0
        %v830 = vpop.f32.mrb[0].mxu0
        %831 = vdwg.mxu0
        %v832 = vadd.f32 %v667, %v827
        %833 = vrot.lane.b32.xlu0 %v351, 104
        %v834 = vpop.permute.xlu0 %833
        %835 = vrot.lane.b32.xlu0 %v351, 72
        %v836 = vpop.permute.xlu0 %835
        %v838 = vsel %vm355, %v834, 0
        %v841 = vsel %vm355, %v836, 0
        %843 = vmatprep.subr.bf16.mxu0 0
        %844 = vmatpush1.bf16.xpose.msra.mxu0 %v841
        %845 = vmatprep.subr.bf16.mxu0 0
        %846 = vmatpush1.bf16.xpose.msra.mxu0 0
        %847 = vmatprep.subr.bf16.mxu0 0
        %848 = vmatpush1.bf16.xpose.msra.mxu0 0
        %849 = vmatprep.subr.bf16.mxu0 0
        %850 = vmatpush1.bf16.xpose.msra.mxu0 0
        %851 = vmatprep.subr.bf16.mxu0 0
        %852 = vmatpush1.bf16.xpose.msra.mxu0 0
        %853 = vmatprep.subr.bf16.mxu0 0
        %854 = vmatpush1.bf16.xpose.msra.mxu0 0
        %855 = vmatprep.subr.bf16.mxu0 0
        %856 = vmatpush1.bf16.xpose.msra.mxu0 0
        %857 = vmatprep.subr.bf16.mxu0 0
        %858 = vmatpush1.bf16.xpose.msra.mxu0 0
        %859 = vmatprep.subr.bf16.mxu0 0
        %860 = vmatpush1.bf16.xpose.msra.mxu0 0
        %861 = vmatprep.subr.bf16.mxu0 0
        %862 = vmatpush1.bf16.xpose.msra.mxu0 0
        %863 = vmatprep.subr.bf16.mxu0 0
        %864 = vmatpush1.bf16.xpose.msra.mxu0 0
        %865 = vmatprep.subr.bf16.mxu0 0
        %866 = vmatpush1.bf16.xpose.msra.mxu0 0
        %867 = vmatprep.subr.bf16.mxu0 0
        %868 = vmatpush1.bf16.xpose.msra.mxu0 0
        %869 = vmatprep.subr.bf16.mxu0 0
        %870 = vmatpush1.bf16.xpose.msra.mxu0 0
        %871 = vmatprep.subr.bf16.mxu0 0
        %872 = vmatpush1.bf16.xpose.msra.mxu0 0
        %873 = vmatprep.subr.bf16.mxu0 0
        %874 = vmatpush1.bf16.xpose.msra.mxu0 0
        %875 = vmatprep.mubr.bf16.mxu0 0
        %876 = vmatmul.mubr.bf16.gmra.mrb[0].mxu0 %v838
        %v877 = vpop.f32.mrb[0].mxu0
        %v878 = vadd.f32 0.0, %v877
        %v879 = vpop.f32.mrb[0].mxu0
        %v880 = vpop.f32.mrb[0].mxu0
        %v881 = vpop.f32.mrb[0].mxu0
        %882 = vdwg.mxu0
        %v883 = vmul.f32 %v878, 0.35355338
        %v884 = vsel %vm355, %v883, -inf
        %885 = vmax.xlane.f32.xlu0 %v884
        %v886 = vpop.xlane.xlu0 %885
        %v887 = vsub.f32 %v883, %v886
        %v888 = vmul.f32 %v887, 1.442695
        %v889 = vpow.pop %v888
        %v890 = vsel %vm355, %v889, 0.0
        %891 = vadd.xlane.f32.xlu0 %v890
        %v892 = vpop.xlane.xlu0 %891
        %v893 = vrcp.pop %v892
        %v894 = vmul.f32 %v889, %v893
        %v895 = vpack.c.bf16 %v894, %v894
        %896 = vrot.lane.b32.xlu0 %v351, 40
        %v897 = vpop.permute.xlu0 %896
        %v899 = vsel %vm355, %v895, 0
        %v902 = vsel %vm420, %v897, 0
        %904 = vmatprep.subr.bf16.mxu0 0
        %905 = vmatpush1.bf16.msra.mxu0 %v902
        %906 = vmatprep.subr.bf16.mxu0 0
        %907 = vmatpush1.bf16.msra.mxu0 0
        %908 = vmatprep.subr.bf16.mxu0 0
        %909 = vmatpush1.bf16.msra.mxu0 0
        %910 = vmatprep.subr.bf16.mxu0 0
        %911 = vmatpush1.bf16.msra.mxu0 0
        %912 = vmatprep.subr.bf16.mxu0 0
        %913 = vmatpush1.bf16.msra.mxu0 0
        %914 = vmatprep.subr.bf16.mxu0 0
        %915 = vmatpush1.bf16.msra.mxu0 0
        %916 = vmatprep.subr.bf16.mxu0 0
        %917 = vmatpush1.bf16.msra.mxu0 0
        %918 = vmatprep.subr.bf16.mxu0 0
        %919 = vmatpush1.bf16.msra.mxu0 0
        %920 = vmatprep.subr.bf16.mxu0 0
        %921 = vmatpush1.bf16.msra.mxu0 0
        %922 = vmatprep.subr.bf16.mxu0 0
        %923 = vmatpush1.bf16.msra.mxu0 0
        %924 = vmatprep.subr.bf16.mxu0 0
        %925 = vmatpush1.bf16.msra.mxu0 0
        %926 = vmatprep.subr.bf16.mxu0 0
        %927 = vmatpush1.bf16.msra.mxu0 0
        %928 = vmatprep.subr.bf16.mxu0 0
        %929 = vmatpush1.bf16.msra.mxu0 0
        %930 = vmatprep.subr.bf16.mxu0 0
        %931 = vmatpush1.bf16.msra.mxu0 0
        %932 = vmatprep.subr.bf16.mxu0 0
        %933 = vmatpush1.bf16.msra.mxu0 0
        %934 = vmatprep.subr.bf16.mxu0 0
        %935 = vmatpush1.bf16.msra.mxu0 0
        %936 = vmatprep.mubr.bf16.mxu0 0
        %937 = vmatmul.mubr.bf16.gmra.mrb[0].mxu0 %v899
        %v938 = vpop.f32.mrb[0].mxu0
        %v939 = vadd.f32 0.0, %v938
        %v940 = vpop.f32.mrb[0].mxu0
        %v941 = vpop.f32.mrb[0].mxu0
        %v942 = vpop.f32.mrb[0].mxu0
        %943 = vdwg.mxu0
        %v944 = vpack.c.bf16 %v939, %v939
        %s945 = scalar_lea.vmem [#allocation8], 12
        %v946 = vld [vmem:[%s945] sm:$0xf]
        %v948 = vsel %vm355, %v944, 0
        %v951 = vsel %vm420, %v946, 0
        %953 = vmatprep.subr.bf16.mxu0 0
        %954 = vmatpush1.bf16.msra.mxu0 %v951
        %955 = vmatprep.subr.bf16.mxu0 0
        %956 = vmatpush1.bf16.msra.mxu0 0
        %957 = vmatprep.subr.bf16.mxu0 0
        %958 = vmatpush1.bf16.msra.mxu0 0
        %959 = vmatprep.subr.bf16.mxu0 0
        %960 = vmatpush1.bf16.msra.mxu0 0
        %961 = vmatprep.subr.bf16.mxu0 0
        %962 = vmatpush1.bf16.msra.mxu0 0
        %963 = vmatprep.subr.bf16.mxu0 0
        %964 = vmatpush1.bf16.msra.mxu0 0
        %965 = vmatprep.subr.bf16.mxu0 0
        %966 = vmatpush1.bf16.msra.mxu0 0
        %967 = vmatprep.subr.bf16.mxu0 0
        %968 = vmatpush1.bf16.msra.mxu0 0
        %969 = vmatprep.subr.bf16.mxu0 0
        %970 = vmatpush1.bf16.msra.mxu0 0
        %971 = vmatprep.subr.bf16.mxu0 0
        %972 = vmatpush1.bf16.msra.mxu0 0
        %973 = vmatprep.subr.bf16.mxu0 0
        %974 = vmatpush1.bf16.msra.mxu0 0
        %975 = vmatprep.subr.bf16.mxu0 0
        %976 = vmatpush1.bf16.msra.mxu0 0
        %977 = vmatprep.subr.bf16.mxu0 0
        %978 = vmatpush1.bf16.msra.mxu0 0
        %979 = vmatprep.subr.bf16.mxu0 0
        %980 = vmatpush1.bf16.msra.mxu0 0
        %981 = vmatprep.subr.bf16.mxu0 0
        %982 = vmatpush1.bf16.msra.mxu0 0
        %983 = vmatprep.subr.bf16.mxu0 0
        %984 = vmatpush1.bf16.msra.mxu0 0
        %985 = vmatprep.mubr.bf16.mxu0 0
        %986 = vmatmul.mubr.bf16.gmra.mrb[0].mxu0 %v948
        %v987 = vpop.f32.mrb[0].mxu0
        %v988 = vadd.f32 0.0, %v987
        %v989 = vpop.f32.mrb[0].mxu0
        %v990 = vpop.f32.mrb[0].mxu0
        %v991 = vpop.f32.mrb[0].mxu0
        %992 = vdwg.mxu0
        %v993 = vadd.f32 %v832, %v988
        %v994 = vadd.f32 %v258, %v993
        %v995 = vld [vmem:[#allocation5 + $0x3] sm:$0x1]
        %v996 = vlaneseq
        %v997 = vshrl.u32 %v996, 7
        %v998 = vsub.s32 0, %v997
        %v999 = vrot.slane %v995, %v998
        %v1000 = vadd.f32 %v994, %v999
        %v1001 = vld [vmem:[#allocation5 + $0x4] sm:$0x1]
        %v1002 = vld [vmem:[#allocation5 + $0x5] sm:$0x1]
        %v1003 = vsel %vm261, %v1000, 0.0
        %1004 = vadd.xlane.f32.xlu0 %v1003
        %v1005 = vpop.xlane.xlu0 %1004
        %v1006 = vmul.f32 %v1005, %v265
        %v1007 = vsub.f32 %v1000, %v1006
        %v1008 = vmul.f32 %v1007, %v1007
        %v1009 = vsel %vm261, %v1008, 0.0
        %1010 = vadd.xlane.f32.xlu0 %v1009
        %v1011 = vpop.xlane.xlu0 %1010
        %v1012 = vmul.f32 %v1011, %v265
        %v1013 = vadd.f32 %v1012, 1e-05
        %v1014 = vrsqrt.pop %v1013
        %v1015 = vmul.f32 %v1007, %v1014
        %v1016 = vlaneseq
        %v1017 = vshrl.u32 %v1016, 7
        %v1018 = vsub.s32 0, %v1017
        %v1019 = vrot.slane %v1001, %v1018
        %v1020 = vmul.f32 %v1015, %v1019
        %v1021 = vlaneseq
        %v1022 = vshrl.u32 %v1021, 7
        %v1023 = vsub.s32 0, %v1022
        %v1024 = vrot.slane %v1002, %v1023
        %v1025 = vadd.f32 %v1020, %v1024
        %v1026 = vlaneseq
        %v1027 = vshrl.u32 %v1026, 7
        %vm1028 = vcmp.lt.s32.totalorder %v1027, 0
        %v1029 = vsub.s32 0, %v1027
        %v1030 = vsel %vm1028, %v1029, %v1027
        %v1031 = vshrl.u32 %v1030, 3
        %v1032 = vand.u32 %v1030, 7
        %v1033 = vsub.s32 0, %v1032
        %v1034 = vsel %vm1028, %v1033, %v1032
        %vm1035 = vcmp.ne.s32.totalorder %v1034, 0
        %vm1036 = vcmp.lt.s32.totalorder %v1034, 0
        %vm1037 = vmand %vm1036, %vm1035
        %v1038 = vadd.s32 %v1034, 8
        %v1039 = vsel %vm1037, %v1038, %v1034
        %vm1040 = vcmp.eq.s32.totalorder %v1039, 0
        %vm1041 = vcmp.eq.s32.totalorder %v1039, 7
        %v1042 = vrot.slane %v1025, 7
        %v1043 = vsel %vm1040, 1, 0
        %vm1044 = vcmp.eq.s32.totalorder %v1043, 1
        %v1045 = vsel %vm1044, 0.0, %v1042
        %v1046 = vrot.slane %v1025, 1
        %v1047 = vsel %vm1041, 1, 0
        %vm1048 = vcmp.eq.s32.totalorder %v1047, 1
        %v1049 = vsel %vm1048, 0.0, %v1046
        %v1050 = vpack.c.bf16 %v1045, %v1045
        %v1051 = vld [vmem:[#allocation7 + $0x10] sm:$0xf]
        %v1052 = vld [vmem:[#allocation7 + $0x14] sm:$0xf]
        %v1053 = vld [vmem:[#allocation7 + $0x18] sm:$0xf]
        %v1054 = vld [vmem:[#allocation7 + $0x1c] sm:$0xf]
        %v1055 = vpack.c.bf16 %v1025, %v1025
        %v1056 = vld [vmem:[#allocation7 + $0x20] sm:$0xf]
        %v1057 = vld [vmem:[#allocation7 + $0x24] sm:$0xf]
        %v1058 = vld [vmem:[#allocation7 + $0x28] sm:$0xf]
        %v1059 = vld [vmem:[#allocation7 + $0x2c] sm:$0xf]
        %v1064 = vunpack.c.l.b16 %v1056
        %v1065 = vunpack.c.l.b16 %v1057
        %v1066 = vunpack.c.l.b16 %v1058
        %v1067 = vunpack.c.l.b16 %v1059
        %v1068 = vpack.c.b16 %v1065, %v1064
        %v1069 = vpack.c.b16 %v1067, %v1066
        %v1073 = vsel %vm261, %v1055, 0
        %1075 = vmatprep.subr.bf16.mxu0 0
        %1076 = vmatpush1.bf16.msra.mxu0 %v1068
        %1077 = vmatprep.subr.bf16.mxu0 0
        %1078 = vmatpush1.bf16.msra.mxu0 %v1069
        %1079 = vmatprep.subr.bf16.mxu0 0
        %1080 = vmatpush1.bf16.msra.mxu0 0
        %1081 = vmatprep.subr.bf16.mxu0 0
        %1082 = vmatpush1.bf16.msra.mxu0 0
        %1083 = vmatprep.subr.bf16.mxu0 0
        %1084 = vmatpush1.bf16.msra.mxu0 0
        %1085 = vmatprep.subr.bf16.mxu0 0
        %1086 = vmatpush1.bf16.msra.mxu0 0
        %1087 = vmatprep.subr.bf16.mxu0 0
        %1088 = vmatpush1.bf16.msra.mxu0 0
        %1089 = vmatprep.subr.bf16.mxu0 0
        %1090 = vmatpush1.bf16.msra.mxu0 0
        %1091 = vmatprep.subr.bf16.mxu0 0
        %1092 = vmatpush1.bf16.msra.mxu0 0
        %1093 = vmatprep.subr.bf16.mxu0 0
        %1094 = vmatpush1.bf16.msra.mxu0 0
        %1095 = vmatprep.subr.bf16.mxu0 0
        %1096 = vmatpush1.bf16.msra.mxu0 0
        %1097 = vmatprep.subr.bf16.mxu0 0
        %1098 = vmatpush1.bf16.msra.mxu0 0
        %1099 = vmatprep.subr.bf16.mxu0 0
        %1100 = vmatpush1.bf16.msra.mxu0 0
        %1101 = vmatprep.subr.bf16.mxu0 0
        %1102 = vmatpush1.bf16.msra.mxu0 0
        %1103 = vmatprep.subr.bf16.mxu0 0
        %1104 = vmatpush1.bf16.msra.mxu0 0
        %1105 = vmatprep.subr.bf16.mxu0 0
        %1106 = vmatpush1.bf16.msra.mxu0 0
        %1107 = vmatprep.mubr.bf16.mxu0 0
        %1108 = vmatmul.mubr.bf16.gmra.mrb[0].mxu0 %v1073
        %v1109 = vpop.f32.mrb[0].mxu0
        %v1110 = vadd.f32 0.0, %v1109
        %v1111 = vpop.f32.mrb[0].mxu0
        %v1112 = vpop.f32.mrb[0].mxu0
        %v1113 = vpop.f32.mrb[0].mxu0
        %1114 = vdwg.mxu0
        %v1119 = vunpack.c.l.b16 %v1051
        %v1120 = vunpack.c.l.b16 %v1052
        %v1121 = vunpack.c.l.b16 %v1053
        %v1122 = vunpack.c.l.b16 %v1054
        %v1123 = vpack.c.b16 %v1120, %v1119
        %v1124 = vpack.c.b16 %v1122, %v1121
        %v1128 = vsel %vm261, %v1050, 0
        %1130 = vmatprep.subr.bf16.mxu0 0
        %1131 = vmatpush1.bf16.msra.mxu0 %v1123
        %1132 = vmatprep.subr.bf16.mxu0 0
        %1133 = vmatpush1.bf16.msra.mxu0 %v1124
        %1134 = vmatprep.subr.bf16.mxu0 0
        %1135 = vmatpush1.bf16.msra.mxu0 0
        %1136 = vmatprep.subr.bf16.mxu0 0
        %1137 = vmatpush1.bf16.msra.mxu0 0
        %1138 = vmatprep.subr.bf16.mxu0 0
        %1139 = vmatpush1.bf16.msra.mxu0 0
        %1140 = vmatprep.subr.bf16.mxu0 0
        %1141 = vmatpush1.bf16.msra.mxu0 0
        %1142 = vmatprep.subr.bf16.mxu0 0
        %1143 = vmatpush1.bf16.msra.mxu0 0
        %1144 = vmatprep.subr.bf16.mxu0 0
        %1145 = vmatpush1.bf16.msra.mxu0 0
        %1146 = vmatprep.subr.bf16.mxu0 0
        %1147 = vmatpush1.bf16.msra.mxu0 0
        %1148 = vmatprep.subr.bf16.mxu0 0
        %1149 = vmatpush1.bf16.msra.mxu0 0
        %1150 = vmatprep.subr.bf16.mxu0 0
        %1151 = vmatpush1.bf16.msra.mxu0 0
        %1152 = vmatprep.subr.bf16.mxu0 0
        %1153 = vmatpush1.bf16.msra.mxu0 0
        %1154 = vmatprep.subr.bf16.mxu0 0
        %1155 = vmatpush1.bf16.msra.mxu0 0
        %1156 = vmatprep.subr.bf16.mxu0 0
        %1157 = vmatpush1.bf16.msra.mxu0 0
        %1158 = vmatprep.subr.bf16.mxu0 0
        %1159 = vmatpush1.bf16.msra.mxu0 0
        %1160 = vmatprep.subr.bf16.mxu0 0
        %1161 = vmatpush1.bf16.msra.mxu0 0
        %1162 = vmatprep.mubr.bf16.mxu0 0
        %1163 = vmatmul.mubr.bf16.gmra.mrb[0].mxu0 %v1128
        %v1164 = vpop.f32.mrb[0].mxu0
        %v1165 = vadd.f32 %v1110, %v1164
        %v1166 = vpop.f32.mrb[0].mxu0
        %v1167 = vpop.f32.mrb[0].mxu0
        %v1168 = vpop.f32.mrb[0].mxu0
        %1169 = vdwg.mxu0
        %v1170 = vpack.c.bf16 %v1049, %v1049
        %v1171 = vld [vmem:[#allocation7 + $0x30] sm:$0xf]
        %v1172 = vld [vmem:[#allocation7 + $0x34] sm:$0xf]
        %v1173 = vld [vmem:[#allocation7 + $0x38] sm:$0xf]
        %v1174 = vld [vmem:[#allocation7 + $0x3c] sm:$0xf]
        %v1179 = vunpack.c.l.b16 %v1171
        %v1180 = vunpack.c.l.b16 %v1172
        %v1181 = vunpack.c.l.b16 %v1173
        %v1182 = vunpack.c.l.b16 %v1174
        %v1183 = vpack.c.b16 %v1180, %v1179
        %v1184 = vpack.c.b16 %v1182, %v1181
        %v1188 = vsel %vm261, %v1170, 0
        %1190 = vmatprep.subr.bf16.mxu0 0
        %1191 = vmatpush1.bf16.msra.mxu0 %v1183
        %1192 = vmatprep.subr.bf16.mxu0 0
        %1193 = vmatpush1.bf16.msra.mxu0 %v1184
        %1194 = vmatprep.subr.bf16.mxu0 0
        %1195 = vmatpush1.bf16.msra.mxu0 0
        %1196 = vmatprep.subr.bf16.mxu0 0
        %1197 = vmatpush1.bf16.msra.mxu0 0
        %1198 = vmatprep.subr.bf16.mxu0 0
        %1199 = vmatpush1.bf16.msra.mxu0 0
        %1200 = vmatprep.subr.bf16.mxu0 0
        %1201 = vmatpush1.bf16.msra.mxu0 0
        %1202 = vmatprep.subr.bf16.mxu0 0
        %1203 = vmatpush1.bf16.msra.mxu0 0
        %1204 = vmatprep.subr.bf16.mxu0 0
        %1205 = vmatpush1.bf16.msra.mxu0 0
        %1206 = vmatprep.subr.bf16.mxu0 0
        %1207 = vmatpush1.bf16.msra.mxu0 0
        %1208 = vmatprep.subr.bf16.mxu0 0
        %1209 = vmatpush1.bf16.msra.mxu0 0
        %1210 = vmatprep.subr.bf16.mxu0 0
        %1211 = vmatpush1.bf16.msra.mxu0 0
        %1212 = vmatprep.subr.bf16.mxu0 0
        %1213 = vmatpush1.bf16.msra.mxu0 0
        %1214 = vmatprep.subr.bf16.mxu0 0
        %1215 = vmatpush1.bf16.msra.mxu0 0
        %1216 = vmatprep.subr.bf16.mxu0 0
        %1217 = vmatpush1.bf16.msra.mxu0 0
        %1218 = vmatprep.subr.bf16.mxu0 0
        %1219 = vmatpush1.bf16.msra.mxu0 0
        %1220 = vmatprep.subr.bf16.mxu0 0
        %1221 = vmatpush1.bf16.msra.mxu0 0
        %1222 = vmatprep.mubr.bf16.mxu0 0
        %1223 = vmatmul.mubr.bf16.gmra.mrb[0].mxu0 %v1188
        %v1224 = vpop.f32.mrb[0].mxu0
        %v1225 = vadd.f32 0.0, %v1224
        %v1226 = vpop.f32.mrb[0].mxu0
        %v1227 = vpop.f32.mrb[0].mxu0
        %v1228 = vpop.f32.mrb[0].mxu0
        %1229 = vdwg.mxu0
        %v1230 = vadd.f32 %v1165, %v1225
        %v1231 = vld [vmem:[#allocation5 + $0x6] sm:$0x1]
        %v1232 = vlaneseq
        %v1233 = vshrl.u32 %v1232, 7
        %v1234 = vsub.s32 0, %v1233
        %v1235 = vrot.slane %v1231, %v1234
        %v1236 = vadd.f32 %v1230, %v1235
        %v1237 = vmul.f32 %v1236, 0.5
        %v1238 = vmul.f32 %v1236, 0.70710677
        %v1239 = verf.f32.pop %v1238
        %v1240 = vadd.f32 %v1239, 1.0
        %v1241 = vmul.f32 %v1237, %v1240
        %v1242 = vrot.slane %v1241, 7
        %v1243 = vsel %vm1044, 0.0, %v1242
        %v1244 = vrot.slane %v1241, 1
        %v1245 = vsel %vm1048, 0.0, %v1244
        %v1246 = vpack.c.bf16 %v1243, %v1243
        %v1247 = vld [vmem:[#allocation7 + $0x40] sm:$0xf]
        %v1248 = vld [vmem:[#allocation7 + $0x44] sm:$0xf]
        %v1249 = vpack.c.bf16 %v1241, %v1241
        %v1250 = vld [vmem:[#allocation7 + $0x48] sm:$0xf]
        %v1251 = vld [vmem:[#allocation7 + $0x4c] sm:$0xf]
        %v1254 = vunpack.c.l.b16 %v1250
        %v1255 = vunpack.c.l.b16 %v1251
        %v1256 = vpack.c.b16 %v1255, %v1254
        %vm1258 = vcmask 130048
        %v1260 = vsel %vm1258, %v1249, 0
        %1262 = vmatprep.subr.bf16.mxu0 0
        %1263 = vmatpush1.bf16.msra.mxu0 %v1256
        %1264 = vmatprep.subr.bf16.mxu0 0
        %1265 = vmatpush1.bf16.msra.mxu0 0
        %1266 = vmatprep.subr.bf16.mxu0 0
        %1267 = vmatpush1.bf16.msra.mxu0 0
        %1268 = vmatprep.subr.bf16.mxu0 0
        %1269 = vmatpush1.bf16.msra.mxu0 0
        %1270 = vmatprep.subr.bf16.mxu0 0
        %1271 = vmatpush1.bf16.msra.mxu0 0
        %1272 = vmatprep.subr.bf16.mxu0 0
        %1273 = vmatpush1.bf16.msra.mxu0 0
        %1274 = vmatprep.subr.bf16.mxu0 0
        %1275 = vmatpush1.bf16.msra.mxu0 0
        %1276 = vmatprep.subr.bf16.mxu0 0
        %1277 = vmatpush1.bf16.msra.mxu0 0
        %1278 = vmatprep.subr.bf16.mxu0 0
        %1279 = vmatpush1.bf16.msra.mxu0 0
        %1280 = vmatprep.subr.bf16.mxu0 0
        %1281 = vmatpush1.bf16.msra.mxu0 0
        %1282 = vmatprep.subr.bf16.mxu0 0
        %1283 = vmatpush1.bf16.msra.mxu0 0
        %1284 = vmatprep.subr.bf16.mxu0 0
        %1285 = vmatpush1.bf16.msra.mxu0 0
        %1286 = vmatprep.subr.bf16.mxu0 0
        %1287 = vmatpush1.bf16.msra.mxu0 0
        %1288 = vmatprep.subr.bf16.mxu0 0
        %1289 = vmatpush1.bf16.msra.mxu0 0
        %1290 = vmatprep.subr.bf16.mxu0 0
        %1291 = vmatpush1.bf16.msra.mxu0 0
        %1292 = vmatprep.subr.bf16.mxu0 0
        %1293 = vmatpush1.bf16.msra.mxu0 0
        %1294 = vmatprep.mubr.bf16.mxu0 0
        %1295 = vmatmul.mubr.bf16.gmra.mrb[0].mxu0 %v1260
        %v1296 = vpop.f32.mrb[0].mxu0
        %v1297 = vadd.f32 0.0, %v1296
        %v1298 = vpop.f32.mrb[0].mxu0
        %v1299 = vpop.f32.mrb[0].mxu0
        %v1300 = vpop.f32.mrb[0].mxu0
        %1301 = vdwg.mxu0
        %v1304 = vunpack.c.l.b16 %v1247
        %v1305 = vunpack.c.l.b16 %v1248
        %v1306 = vpack.c.b16 %v1305, %v1304
        %v1309 = vsel %vm1258, %v1246, 0
        %1311 = vmatprep.subr.bf16.mxu0 0
        %1312 = vmatpush1.bf16.msra.mxu0 %v1306
        %1313 = vmatprep.subr.bf16.mxu0 0
        %1314 = vmatpush1.bf16.msra.mxu0 0
        %1315 = vmatprep.subr.bf16.mxu0 0
        %1316 = vmatpush1.bf16.msra.mxu0 0
        %1317 = vmatprep.subr.bf16.mxu0 0
        %1318 = vmatpush1.bf16.msra.mxu0 0
        %1319 = vmatprep.subr.bf16.mxu0 0
        %1320 = vmatpush1.bf16.msra.mxu0 0
        %1321 = vmatprep.subr.bf16.mxu0 0
        %1322 = vmatpush1.bf16.msra.mxu0 0
        %1323 = vmatprep.subr.bf16.mxu0 0
        %1324 = vmatpush1.bf16.msra.mxu0 0
        %1325 = vmatprep.subr.bf16.mxu0 0
        %1326 = vmatpush1.bf16.msra.mxu0 0
        %1327 = vmatprep.subr.bf16.mxu0 0
        %1328 = vmatpush1.bf16.msra.mxu0 0
        %1329 = vmatprep.subr.bf16.mxu0 0
        %1330 = vmatpush1.bf16.msra.mxu0 0
        %1331 = vmatprep.subr.bf16.mxu0 0
        %1332 = vmatpush1.bf16.msra.mxu0 0
        %1333 = vmatprep.subr.bf16.mxu0 0
        %1334 = vmatpush1.bf16.msra.mxu0 0
        %1335 = vmatprep.subr.bf16.mxu0 0
        %1336 = vmatpush1.bf16.msra.mxu0 0
        %1337 = vmatprep.subr.bf16.mxu0 0
        %1338 = vmatpush1.bf16.msra.mxu0 0
        %1339 = vmatprep.subr.bf16.mxu0 0
        %1340 = vmatpush1.bf16.msra.mxu0 0
        %1341 = vmatprep.subr.bf16.mxu0 0
        %1342 = vmatpush1.bf16.msra.mxu0 0
        %1343 = vmatprep.mubr.bf16.mxu0 0
        %1344 = vmatmul.mubr.bf16.gmra.mrb[0].mxu0 %v1309
        %v1345 = vpop.f32.mrb[0].mxu0
        %v1346 = vadd.f32 %v1297, %v1345
        %v1347 = vpop.f32.mrb[0].mxu0
        %v1348 = vpop.f32.mrb[0].mxu0
        %v1349 = vpop.f32.mrb[0].mxu0
        %1350 = vdwg.mxu0
        %v1351 = vpack.c.bf16 %v1245, %v1245
        %v1352 = vld [vmem:[#allocation7 + $0x50] sm:$0xf]
        %v1353 = vld [vmem:[#allocation7 + $0x54] sm:$0xf]
        %v1356 = vunpack.c.l.b16 %v1352
        %v1357 = vunpack.c.l.b16 %v1353
        %v1358 = vpack.c.b16 %v1357, %v1356
        %v1361 = vsel %vm1258, %v1351, 0
        %1363 = vmatprep.subr.bf16.mxu0 0
        %1364 = vmatpush1.bf16.msra.mxu0 %v1358
        %1365 = vmatprep.subr.bf16.mxu0 0
        %1366 = vmatpush1.bf16.msra.mxu0 0
        %1367 = vmatprep.subr.bf16.mxu0 0
        %1368 = vmatpush1.bf16.msra.mxu0 0
        %1369 = vmatprep.subr.bf16.mxu0 0
        %1370 = vmatpush1.bf16.msra.mxu0 0
        %1371 = vmatprep.subr.bf16.mxu0 0
        %1372 = vmatpush1.bf16.msra.mxu0 0
        %1373 = vmatprep.subr.bf16.mxu0 0
        %1374 = vmatpush1.bf16.msra.mxu0 0
        %1375 = vmatprep.subr.bf16.mxu0 0
        %1376 = vmatpush1.bf16.msra.mxu0 0
        %1377 = vmatprep.subr.bf16.mxu0 0
        %1378 = vmatpush1.bf16.msra.mxu0 0
        %1379 = vmatprep.subr.bf16.mxu0 0
        %1380 = vmatpush1.bf16.msra.mxu0 0
        %1381 = vmatprep.subr.bf16.mxu0 0
        %1382 = vmatpush1.bf16.msra.mxu0 0
        %1383 = vmatprep.subr.bf16.mxu0 0
        %1384 = vmatpush1.bf16.msra.mxu0 0
        %1385 = vmatprep.subr.bf16.mxu0 0
        %1386 = vmatpush1.bf16.msra.mxu0 0
        %1387 = vmatprep.subr.bf16.mxu0 0
        %1388 = vmatpush1.bf16.msra.mxu0 0
        %1389 = vmatprep.subr.bf16.mxu0 0
        %1390 = vmatpush1.bf16.msra.mxu0 0
        %1391 = vmatprep.subr.bf16.mxu0 0
        %1392 = vmatpush1.bf16.msra.mxu0 0
        %1393 = vmatprep.subr.bf16.mxu0 0
        %1394 = vmatpush1.bf16.msra.mxu0 0
        %1395 = vmatprep.mubr.bf16.mxu0 0
        %1396 = vmatmul.mubr.bf16.gmra.mrb[0].mxu0 %v1361
        %v1397 = vpop.f32.mrb[0].mxu0
        %v1398 = vadd.f32 0.0, %v1397
        %v1399 = vpop.f32.mrb[0].mxu0
        %v1400 = vpop.f32.mrb[0].mxu0
        %v1401 = vpop.f32.mrb[0].mxu0
        %1402 = vdwg.mxu0
        %v1403 = vadd.f32 %v1346, %v1398
        %v1404 = vld [vmem:[#allocation5 + $0x7] sm:$0x1]
        %v1405 = vlaneseq
        %v1406 = vshrl.u32 %v1405, 7
        %v1407 = vsub.s32 0, %v1406
        %v1408 = vrot.slane %v1404, %v1407
        %v1409 = vadd.f32 %v1403, %v1408
        %v1410 = vpack.c.bf16 %v1000, %v1000
        %v1411 = vld [vmem:[#allocation7 + $0x58] sm:$0xf]
        %v1412 = vld [vmem:[#allocation7 + $0x5c] sm:$0xf]
        %v1413 = vld [vmem:[#allocation7 + $0x60] sm:$0xf]
        %v1414 = vld [vmem:[#allocation7 + $0x64] sm:$0xf]
        %v1415 = vld [vmem:[#allocation5 + $0x8] sm:$0x1]
        %v1416 = vlaneseq
        %v1417 = vshrl.u32 %v1416, 7
        %v1418 = vsub.s32 0, %v1417
        %v1419 = vrot.slane %v1415, %v1418
        %v1424 = vunpack.c.l.b16 %v1411
        %v1425 = vunpack.c.l.b16 %v1412
        %v1426 = vunpack.c.l.b16 %v1413
        %v1427 = vunpack.c.l.b16 %v1414
        %v1428 = vpack.c.b16 %v1425, %v1424
        %v1429 = vpack.c.b16 %v1427, %v1426
        %v1433 = vsel %vm261, %v1410, 0
        %1435 = vmatprep.subr.bf16.mxu0 0
        %1436 = vmatpush1.bf16.msra.mxu0 %v1428
        %1437 = vmatprep.subr.bf16.mxu0 0
        %1438 = vmatpush1.bf16.msra.mxu0 %v1429
        %1439 = vmatprep.subr.bf16.mxu0 0
        %1440 = vmatpush1.bf16.msra.mxu0 0
        %1441 = vmatprep.subr.bf16.mxu0 0
        %1442 = vmatpush1.bf16.msra.mxu0 0
        %1443 = vmatprep.subr.bf16.mxu0 0
        %1444 = vmatpush1.bf16.msra.mxu0 0
        %1445 = vmatprep.subr.bf16.mxu0 0
        %1446 = vmatpush1.bf16.msra.mxu0 0
        %1447 = vmatprep.subr.bf16.mxu0 0
        %1448 = vmatpush1.bf16.msra.mxu0 0
        %1449 = vmatprep.subr.bf16.mxu0 0
        %1450 = vmatpush1.bf16.msra.mxu0 0
        %1451 = vmatprep.subr.bf16.mxu0 0
        %1452 = vmatpush1.bf16.msra.mxu0 0
        %1453 = vmatprep.subr.bf16.mxu0 0
        %1454 = vmatpush1.bf16.msra.mxu0 0
        %1455 = vmatprep.subr.bf16.mxu0 0
        %1456 = vmatpush1.bf16.msra.mxu0 0
        %1457 = vmatprep.subr.bf16.mxu0 0
        %1458 = vmatpush1.bf16.msra.mxu0 0
        %1459 = vmatprep.subr.bf16.mxu0 0
        %1460 = vmatpush1.bf16.msra.mxu0 0
        %1461 = vmatprep.subr.bf16.mxu0 0
        %1462 = vmatpush1.bf16.msra.mxu0 0
        %1463 = vmatprep.subr.bf16.mxu0 0
        %1464 = vmatpush1.bf16.msra.mxu0 0
        %1465 = vmatprep.subr.bf16.mxu0 0
        %1466 = vmatpush1.bf16.msra.mxu0 0
        %1467 = vmatprep.mubr.bf16.mxu0 0
        %1468 = vmatmul.mubr.bf16.gmra.mrb[0].mxu0 %v1433
        %v1469 = vpop.f32.mrb[0].mxu0
        %v1470 = vadd.f32 %v1419, %v1469
        %v1471 = vpop.f32.mrb[0].mxu0
        %v1472 = vpop.f32.mrb[0].mxu0
        %v1473 = vpop.f32.mrb[0].mxu0
        %1474 = vdwg.mxu0
        %v1475 = vadd.f32 %v1470, %v1409
        %v1476 = vld [vmem:[#allocation5 + $0x9] sm:$0x1]
        %v1477 = vld [vmem:[#allocation5 + $0xa] sm:$0x1]
        %v1478 = vsel %vm1258, %v1475, 0.0
        %1479 = vadd.xlane.f32.xlu0 %v1478
        %v1480 = vpop.xlane.xlu0 %1479
        %v1481 = vrcp.pop 16.0
        %v1482 = vmul.f32 %v1480, %v1481
        %v1483 = vsub.f32 %v1475, %v1482
        %v1484 = vmul.f32 %v1483, %v1483
        %v1485 = vsel %vm1258, %v1484, 0.0
        %1486 = vadd.xlane.f32.xlu0 %v1485
        %v1487 = vpop.xlane.xlu0 %1486
        %v1488 = vmul.f32 %v1487, %v1481
        %v1489 = vadd.f32 %v1488, 1e-05
        %v1490 = vrsqrt.pop %v1489
        %v1491 = vmul.f32 %v1483, %v1490
        %v1492 = vlaneseq
        %v1493 = vshrl.u32 %v1492, 7
        %v1494 = vsub.s32 0, %v1493
        %v1495 = vrot.slane %v1476, %v1494
        %v1496 = vmul.f32 %v1491, %v1495
        %v1497 = vlaneseq
        %v1498 = vshrl.u32 %v1497, 7
        %v1499 = vsub.s32 0, %v1498
        %v1500 = vrot.slane %v1477, %v1499
        %v1501 = vadd.f32 %v1496, %v1500
        %1502 = vst.msk [vmem:[%s256] sm:$0xff] %vm1258, %v1501
        %s1503 = sand.u32 %s120, 1
        %s1504 = scalar_lea.sflag [#allocation4], %s1503
        %s1505 = sand.u32 %s120, 1
        %s1506 = smul.addr %s1505, 8
        %s1507 = scalar_lea.vmem [#allocation10], %s1506
        // Predicated region
        $region53: #{tpu_custom_call.1} parent=35 // pred_check
          %p1508 = pneg %p130
        $region54: #{tpu_custom_call.1} parent=35 // pred_check_branch
          %1510 = sbr.rel (%p1508) target = $region56
        $region55: #{tpu_custom_call.1} parent=35 // pred_region
          %s1512 = ssub.s32 128, 128
          %1513 = vsyncadd %s1504, %s1512
          %s1514 = smul.addr %s23, 128
          %s1515 = scalar_lea.hbm %s4, %s1514
          %s1517 = sshll.u32 %s1507, 4
          %s1518 = int_to_ptr.vmem [resolvable:$true] %s1517
          %1520 = dma.vmem_to_hbm [thread:$0]  %s1518, 128, %s1515, %s1504
        $region56: #{tpu_custom_call.1} parent=35 // pred_fallthru
          _
      $region36: #{tpu_custom_call.1} parent=5 // pred_fallthru
        _
      %p1521 = scmp.le.s32.totalorder 2, %s18
      // Predicated region
      $region57: #{tpu_custom_call.1} parent=5 // pred_check
        %p1522 = pneg %p1521
      $region58: #{tpu_custom_call.1} parent=5 // pred_check_branch
        %1524 = sbr.rel (%p1522) target = $region60
      $region59: #{tpu_custom_call.1} parent=5 // pred_region
        %s1525 = ssub.s32 %s18, 2
        // Predicated region
        $region61: #{tpu_custom_call.1} parent=59 // pred_check
          %p1526 = pneg %p136
        $region62: #{tpu_custom_call.1} parent=59 // pred_check_branch
          %1528 = sbr.rel (%p1526) target = $region64
        $region63: #{tpu_custom_call.1} parent=59 // pred_region
          %s1529 = sand.u32 %s121, 1
          %s1530 = scalar_lea.sflag [#allocation4], %s1529
          %s1531 = sand.u32 %s121, 1
          %s1532 = smul.addr %s1531, 8
          %s1533 = scalar_lea.vmem [#allocation10], %s1532
          %1534 = dma.done %s1530, 128
        $region64: #{tpu_custom_call.1} parent=59 // pred_fallthru
          _
      $region60: #{tpu_custom_call.1} parent=5 // pred_fallthru
        _
    $region6: #{tpu_custom_call.1} parent=1 // loop_footer
      %s22 = sadd.s32 1, %s18
    $region7: #{tpu_custom_call.1} parent=1 // loop_footer_branch
      %17 = sbr.rel target = $region3
    $region8: #{tpu_custom_call.1} parent=1 // loop_exit
      _
    %1535 = vsyncpa [#allocation3], 1
    %s1536 = scalar_lea.sflag [#allocation3], 1
    %1537 = vsyncpa %s1536, 1
    %1538 = vsyncpa [#allocation6], 1
    %1539 = vsyncpa [#allocation9], 1
    %1540 = vsyncpa [#allocation4], 1
    %s1541 = scalar_lea.sflag [#allocation4], 1
    %1542 = vsyncpa %s1541, 1

</llo_original>
